<compile_context>
chip_gen: v5e
topology: v5e:2x2
jax: 0.10.0
libtpu: 0.0.40
codegen_flags: <defaults>
</compile_context>

<pallas_src>
import jax
import jax.numpy as jnp
from jax.experimental import pallas as pl
from jax.experimental.pallas import tpu as pltpu


def dot_attention_kernel(x_ref, ctx_ref, wc_ref, wx_ref, b_ref, out_ref, wts_ref):
    # Promote x to f32 so all products/reductions accumulate in f32 even for
    # bf16 inputs (type promotion makes ctx * x_f32 an f32 product).
    x = x_ref[...].astype(jnp.float32)        # (Bt, H) f32
    ctx = ctx_ref[...]                        # (Bt, S, H) input dtype

    # scores[b, s] = sum_h ctx[b, s, h] * x[b, h]
    # VPU multiply + lane reduce (MXU free dim would be 1 -> <1% utilization).
    scores = jnp.sum(ctx * x[:, None, :], axis=-1)           # (Bt, S) f32

    # Numerically stable softmax over the sequence axis (exact divide).
    m = jnp.max(scores, axis=-1, keepdims=True)
    e = jnp.exp(scores - m)
    denom = jnp.sum(e, axis=-1, keepdims=True)
    wts = e / denom                                           # (Bt, S) f32
    wts_ref[...] = wts.astype(wts_ref.dtype)

    # c_t[b, h] = sum_s wts[b, s] * ctx[b, s, h]   (f32 via promotion)
    c_t = jnp.sum(wts[:, :, None] * ctx, axis=1)              # (Bt, H) f32

    # output = relu(c_t @ Wc + x @ Wx + b)  (== relu(cat([c_t, x]) @ W^T + b))
    y = jnp.dot(c_t, wc_ref[...], preferred_element_type=jnp.float32)
    y = y + jnp.dot(x, wx_ref[...], preferred_element_type=jnp.float32)
    y = y + b_ref[...].astype(jnp.float32)
    out_ref[...] = jnp.maximum(y, 0.0).astype(out_ref.dtype)


def _vmem_limit_bytes():
    """Scoped-VMEM limit derived from the actual part (v5e/v6e 128 MiB, v7x 64 MiB)."""
    cap = None
    try:
        cap = getattr(pltpu.get_tpu_info(), "vmem_capacity_bytes", None)
    except Exception:
        cap = None
    if not cap:
        cap = 64 * 1024 * 1024        # conservative fallback: v7x per-TC VMEM
    return int(cap) * 3 // 4          # leave headroom for compiler scratch


def _choose_block_b(B, S, H, ctx_isz, x_isz, w_isz, vmem_limit_bytes):
    """Largest batch tile that fits the scoped-VMEM budget AND keeps >=2 grid steps."""
    if B <= 8:
        return B                       # single full-array block (sublane rule needs 8 | block_b)

    # Resident (single-buffered) weights + bias, plus fixed headroom.
    resident = (2 * H * H + H) * w_isz
    headroom = 2 * 1024 * 1024
    avail = max(vmem_limit_bytes - resident - headroom, 1 << 20)

    # Per-batch-row VMEM cost: double-buffered context slab dominates; also
    # account for the in-kernel f32 broadcast-product temporaries and the
    # small double-buffered x / out / wts tiles.
    per_row = (
        2 * S * H * ctx_isz            # context, double-buffered
        + 2 * S * H * 4                # f32 product temporaries (scores / c_t paths)
        + 2 * (2 * H) * x_isz          # x tile + out tile, double-buffered
        + 2 * S * 4                    # wts output (f32), double-buffered
        + 2 * (S + 2 * H) * 4          # scores/e/c_t f32 temporaries
    )
    rows = int(avail // per_row)

    # Guarantee >=2 grid steps (>=4 when B is large) so prefetch/writeback
    # overlap exists and v7x's second TensorCore gets a balanced share.
    steps_target = 4 if B >= 32 else 2
    cap = -(-B // steps_target)        # cdiv(B, steps_target)
    cap = -(-cap // 8) * 8             # round up to sublane multiple
    rows = min(rows, cap)

    rows = max(8, (rows // 8) * 8)     # sublane-aligned, at least one vreg of rows
    return min(rows, B)


def dot_attention(x, context, weight, bias, *, block_b=None, vmem_limit_bytes=None):
    """x: (B, H), context: (B, S, H), weight: (H, 2H) [PyTorch layout], bias: (H,)."""
    B, H = x.shape
    S = context.shape[1]

    wt = weight.T                      # (2H, H)
    wc = wt[:H, :]                     # rows multiplying c_t
    wx = wt[H:, :]                     # rows multiplying x
    b2 = bias.reshape(1, H)

    if vmem_limit_bytes is None:
        vmem_limit_bytes = _vmem_limit_bytes()
    if block_b is None:
        block_b = _choose_block_b(
            B, S, H,
            jnp.dtype(context.dtype).itemsize,
            jnp.dtype(x.dtype).itemsize,
            jnp.dtype(weight.dtype).itemsize,
            vmem_limit_bytes,
        )
    block_b = min(block_b, B)
    grid = (pl.cdiv(B, block_b),)

    def build_call(single_buffer_resident):
        resident_kwargs = (
            dict(pipeline_mode=pl.Buffered(1)) if single_buffer_resident else {}
        )
        in_specs = [
            pl.BlockSpec((block_b, H), lambda i: (i, 0)),         # x tile
            pl.BlockSpec((block_b, S, H), lambda i: (i, 0, 0)),   # context tile
            pl.BlockSpec((H, H), lambda i: (0, 0), **resident_kwargs),  # Wc (resident)
            pl.BlockSpec((H, H), lambda i: (0, 0), **resident_kwargs),  # Wx (resident)
            pl.BlockSpec((1, H), lambda i: (0, 0), **resident_kwargs),  # bias (resident)
        ]
        return pl.pallas_call(
            dot_attention_kernel,
            grid=grid,
            out_shape=(
                jax.ShapeDtypeStruct((B, H), x.dtype),        # output
                jax.ShapeDtypeStruct((B, S), jnp.float32),    # attention weights (f32)
            ),
            in_specs=in_specs,
            out_specs=(
                pl.BlockSpec((block_b, H), lambda i: (i, 0)),
                pl.BlockSpec((block_b, S), lambda i: (i, 0)),
            ),
            compiler_params=pltpu.CompilerParams(
                dimension_semantics=("parallel",),            # shard batch over TCs
                vmem_limit_bytes=vmem_limit_bytes,            # same budget as sizing
            ),
        )

    try:
        return build_call(True)(x, context, wc, wx, b2)
    except Exception:
        # Fallback if this jax version rejects Buffered(1): default (double-
        # buffered) resident specs are still correct, just use a bit more VMEM.
        return build_call(False)(x, context, wc, wx, b2)


def _reference(x, context, weight, bias):
    scores = jnp.einsum("bsh,bh->bs", context, x)
    wts = jax.nn.softmax(scores, axis=1)
    c_t = jnp.einsum("bs,bsh->bh", wts, context)
    cat = jnp.concatenate([c_t, x], axis=1)
    out = jax.nn.relu(cat @ weight.T + bias)
    return out, wts


if __name__ == "__main__":
    B, S, H = 16, 8, 32        # small shapes; auto block_b=8 exercises a 2-step grid

    key = jax.random.PRNGKey(0)
    kx, kc, kw, kb = jax.random.split(key, 4)

    x = jax.random.normal(kx, (B, H), dtype=jnp.float32)
    context = jax.random.normal(kc, (B, S, H), dtype=jnp.float32)

    # Deterministic parameter init (nn.Linear(2H, H): weight (H, 2H), bias (H,))
    bound = 1.0 / jnp.sqrt(2.0 * H)
    weight = jax.random.uniform(kw, (H, 2 * H), jnp.float32, -bound, bound)
    bias = jax.random.uniform(kb, (H,), jnp.float32, -bound, bound)

    out, wts = dot_attention(x, context, weight, bias)
    jax.block_until_ready((out, wts))

    out_ref, wts_ref = _reference(x, context, weight, bias)
    assert out.shape == (B, H) and wts.shape == (B, S)
    assert jnp.allclose(out, out_ref, atol=1e-5, rtol=1e-5)
    assert jnp.allclose(wts, wts_ref, atol=1e-5, rtol=1e-5)

    print("KERNEL_OK")
</pallas_src>

<mosaic_0001>
module attributes {stable_mosaic.version = 11 : i64} {
  func.func @dot_attention_kernel(%arg0: i32, %arg1: memref<8x32xf32, #tpu.memory_space<vmem>>, %arg2: memref<8x8x32xf32, #tpu.memory_space<vmem>>, %arg3: memref<32x32xf32, #tpu.memory_space<vmem>>, %arg4: memref<32x32xf32, #tpu.memory_space<vmem>>, %arg5: memref<1x32xf32, #tpu.memory_space<vmem>>, %arg6: memref<8x32xf32, #tpu.memory_space<vmem>>, %arg7: memref<8x8xf32, #tpu.memory_space<vmem>>) attributes {dimension_semantics = [#tpu.dimension_semantics<parallel>], iteration_bounds = array<i64: 2>, scalar_prefetch = 0 : i64, scratch_operands = 0 : i64, tpu.core_type = #tpu.core_type<tc>, window_params = [{transform_indices = @transform_0, window_bounds = array<i64: 8, 32>}, {transform_indices = @transform_1, window_bounds = array<i64: 8, 8, 32>}, {pipeline_mode = #tpu.pipeline_mode<synchronous>, transform_indices = @transform_2, window_bounds = array<i64: 32, 32>}, {pipeline_mode = #tpu.pipeline_mode<synchronous>, transform_indices = @transform_3, window_bounds = array<i64: 32, 32>}, {pipeline_mode = #tpu.pipeline_mode<synchronous>, transform_indices = @transform_4, window_bounds = array<i64: 1, 32>}, {transform_indices = @transform_5, window_bounds = array<i64: 8, 32>}, {transform_indices = @transform_6, window_bounds = array<i64: 8, 8>}]} {
    %c0 = arith.constant 0 : index
    %c0_0 = arith.constant 0 : index
    %0 = vector.load %arg1[%c0, %c0_0] : memref<8x32xf32, #tpu.memory_space<vmem>>, vector<8x32xf32>
    %c0_1 = arith.constant 0 : index
    %c0_2 = arith.constant 0 : index
    %c0_3 = arith.constant 0 : index
    %1 = vector.load %arg2[%c0_1, %c0_2, %c0_3] : memref<8x8x32xf32, #tpu.memory_space<vmem>>, vector<8x8x32xf32>
    %2 = vector.shape_cast %0 : vector<8x32xf32> to vector<8x1x32xf32>
    %3 = vector.broadcast %2 : vector<8x1x32xf32> to vector<8x8x32xf32>
    %4 = arith.mulf %1, %3 : vector<8x8x32xf32>
    %cst = arith.constant dense<0.000000e+00> : vector<8x8xf32>
    %5 = vector.multi_reduction <add>, %4, %cst [2] : vector<8x8x32xf32> to vector<8x8xf32>
    %cst_4 = arith.constant dense<0xFF800000> : vector<8xf32>
    %6 = vector.multi_reduction <maximumf>, %5, %cst_4 [1] : vector<8x8xf32> to vector<8xf32>
    %7 = vector.shape_cast %6 : vector<8xf32> to vector<8x1xf32>
    %8 = vector.broadcast %7 : vector<8x1xf32> to vector<8x8xf32>
    %9 = arith.subf %5, %8 : vector<8x8xf32>
    %10 = math.exp %9 : vector<8x8xf32>
    %cst_5 = arith.constant dense<0.000000e+00> : vector<8xf32>
    %11 = vector.multi_reduction <add>, %10, %cst_5 [1] : vector<8x8xf32> to vector<8xf32>
    %12 = vector.shape_cast %11 : vector<8xf32> to vector<8x1xf32>
    %13 = vector.broadcast %12 : vector<8x1xf32> to vector<8x8xf32>
    %14 = arith.divf %10, %13 : vector<8x8xf32>
    %c0_6 = arith.constant 0 : index
    %c0_7 = arith.constant 0 : index
    %15 = vector.load %arg7[%c0_6, %c0_7] : memref<8x8xf32, #tpu.memory_space<vmem>>, vector<8x8xf32>
    tpu.vector_store %arg7[%c0_6, %c0_7], %14 {strides = array<i32>} : memref<8x8xf32, #tpu.memory_space<vmem>>, vector<8x8xf32>,
    %16 = vector.shape_cast %14 : vector<8x8xf32> to vector<8x8x1xf32>
    %17 = vector.broadcast %16 : vector<8x8x1xf32> to vector<8x8x32xf32>
    %18 = arith.mulf %17, %1 : vector<8x8x32xf32>
    %cst_8 = arith.constant dense<0.000000e+00> : vector<8x32xf32>
    %19 = vector.multi_reduction <add>, %18, %cst_8 [1] : vector<8x8x32xf32> to vector<8x32xf32>
    %c0_9 = arith.constant 0 : index
    %c0_10 = arith.constant 0 : index
    %20 = vector.load %arg3[%c0_9, %c0_10] : memref<32x32xf32, #tpu.memory_space<vmem>>, vector<32x32xf32>
    %cst_11 = arith.constant dense<0.000000e+00> : vector<8x32xf32>
    %21 = tpu.matmul %19, %20, %cst_11 {dimension_numbers = #tpu.dot_dimension_numbers<[1], [0], [0], [1], [0, 0, 1, 1], [], []>} : vector<8x32xf32>, vector<32x32xf32>, vector<8x32xf32> -> vector<8x32xf32>
    %c0_12 = arith.constant 0 : index
    %c0_13 = arith.constant 0 : index
    %22 = vector.load %arg4[%c0_12, %c0_13] : memref<32x32xf32, #tpu.memory_space<vmem>>, vector<32x32xf32>
    %cst_14 = arith.constant dense<0.000000e+00> : vector<8x32xf32>
    %23 = tpu.matmul %0, %22, %cst_14 {dimension_numbers = #tpu.dot_dimension_numbers<[1], [0], [0], [1], [0, 0, 1, 1], [], []>} : vector<8x32xf32>, vector<32x32xf32>, vector<8x32xf32> -> vector<8x32xf32>
    %24 = arith.addf %21, %23 : vector<8x32xf32>
    %c0_15 = arith.constant 0 : index
    %c0_16 = arith.constant 0 : index
    %25 = vector.load %arg5[%c0_15, %c0_16] : memref<1x32xf32, #tpu.memory_space<vmem>>, vector<1x32xf32>
    %26 = vector.broadcast %25 : vector<1x32xf32> to vector<8x32xf32>
    %27 = arith.addf %24, %26 : vector<8x32xf32>
    %cst_17 = arith.constant 0.000000e+00 : f32
    %28 = vector.broadcast %cst_17 : f32 to vector<8x32xf32>
    %29 = arith.maximumf %27, %28 : vector<8x32xf32>
    %c0_18 = arith.constant 0 : index
    %c0_19 = arith.constant 0 : index
    %30 = vector.load %arg6[%c0_18, %c0_19] : memref<8x32xf32, #tpu.memory_space<vmem>>, vector<8x32xf32>
    tpu.vector_store %arg6[%c0_18, %c0_19], %29 {strides = array<i32>} : memref<8x32xf32, #tpu.memory_space<vmem>>, vector<8x32xf32>,
    return
  }
  func.func @transform_0(%arg0: i32) -> (i32, i32) {
    %c0_i32 = arith.constant 0 : i32
    %c0_i32_0 = arith.constant 0 : i32
    return %arg0, %c0_i32 : i32, i32
  }
  func.func @transform_1(%arg0: i32) -> (i32, i32, i32) {
    %c0_i32 = arith.constant 0 : i32
    %c0_i32_0 = arith.constant 0 : i32
    %c0_i32_1 = arith.constant 0 : i32
    return %arg0, %c0_i32, %c0_i32_0 : i32, i32, i32
  }
  func.func @transform_2(%arg0: i32) -> (i32, i32) {
    %c0_i32 = arith.constant 0 : i32
    %c0_i32_0 = arith.constant 0 : i32
    %c0_i32_1 = arith.constant 0 : i32
    return %c0_i32, %c0_i32_0 : i32, i32
  }
  func.func @transform_3(%arg0: i32) -> (i32, i32) {
    %c0_i32 = arith.constant 0 : i32
    %c0_i32_0 = arith.constant 0 : i32
    %c0_i32_1 = arith.constant 0 : i32
    return %c0_i32, %c0_i32_0 : i32, i32
  }
  func.func @transform_4(%arg0: i32) -> (i32, i32) {
    %c0_i32 = arith.constant 0 : i32
    %c0_i32_0 = arith.constant 0 : i32
    %c0_i32_1 = arith.constant 0 : i32
    return %c0_i32, %c0_i32_0 : i32, i32
  }
  func.func @transform_5(%arg0: i32) -> (i32, i32) {
    %c0_i32 = arith.constant 0 : i32
    %c0_i32_0 = arith.constant 0 : i32
    return %arg0, %c0_i32 : i32, i32
  }
  func.func @transform_6(%arg0: i32) -> (i32, i32) {
    %c0_i32 = arith.constant 0 : i32
    %c0_i32_0 = arith.constant 0 : i32
    return %arg0, %c0_i32 : i32, i32
  }
}

module attributes {stable_mosaic.version = 11 : i64} {
  func.func @dot_attention_kernel(%arg0: i32, %arg1: memref<8x32xf32, #tpu.memory_space<vmem>>, %arg2: memref<8x8x32xf32, #tpu.memory_space<vmem>>, %arg3: memref<32x32xf32, #tpu.memory_space<vmem>>, %arg4: memref<32x32xf32, #tpu.memory_space<vmem>>, %arg5: memref<1x32xf32, #tpu.memory_space<vmem>>, %arg6: memref<8x32xf32, #tpu.memory_space<vmem>>, %arg7: memref<8x8xf32, #tpu.memory_space<vmem>>) attributes {dimension_semantics = [#tpu.dimension_semantics<parallel>], iteration_bounds = array<i64: 2>, scalar_prefetch = 0 : i64, scratch_operands = 0 : i64, tpu.core_type = #tpu.core_type<tc>, window_params = [{transform_indices = @transform_0, window_bounds = array<i64: 8, 32>}, {transform_indices = @transform_1, window_bounds = array<i64: 8, 8, 32>}, {pipeline_mode = #tpu.pipeline_mode<synchronous>, transform_indices = @transform_2, window_bounds = array<i64: 32, 32>}, {pipeline_mode = #tpu.pipeline_mode<synchronous>, transform_indices = @transform_3, window_bounds = array<i64: 32, 32>}, {pipeline_mode = #tpu.pipeline_mode<synchronous>, transform_indices = @transform_4, window_bounds = array<i64: 1, 32>}, {transform_indices = @transform_5, window_bounds = array<i64: 8, 32>}, {transform_indices = @transform_6, window_bounds = array<i64: 8, 8>}]} {
    %c0 = arith.constant 0 : index
    %c0_0 = arith.constant 0 : index
    %0 = vector.load %arg1[%c0, %c0_0] : memref<8x32xf32, #tpu.memory_space<vmem>>, vector<8x32xf32>
    %c0_1 = arith.constant 0 : index
    %c0_2 = arith.constant 0 : index
    %c0_3 = arith.constant 0 : index
    %1 = vector.load %arg2[%c0_1, %c0_2, %c0_3] : memref<8x8x32xf32, #tpu.memory_space<vmem>>, vector<8x8x32xf32>
    %2 = vector.shape_cast %0 : vector<8x32xf32> to vector<8x1x32xf32>
    %3 = vector.broadcast %2 : vector<8x1x32xf32> to vector<8x8x32xf32>
    %4 = arith.mulf %1, %3 : vector<8x8x32xf32>
    %cst = arith.constant dense<0.000000e+00> : vector<8x8xf32>
    %5 = vector.multi_reduction <add>, %4, %cst [2] : vector<8x8x32xf32> to vector<8x8xf32>
    %cst_4 = arith.constant dense<0xFF800000> : vector<8xf32>
    %6 = vector.multi_reduction <maximumf>, %5, %cst_4 [1] : vector<8x8xf32> to vector<8xf32>
    %7 = vector.shape_cast %6 : vector<8xf32> to vector<8x1xf32>
    %8 = vector.broadcast %7 : vector<8x1xf32> to vector<8x8xf32>
    %9 = arith.subf %5, %8 : vector<8x8xf32>
    %10 = math.exp %9 : vector<8x8xf32>
    %cst_5 = arith.constant dense<0.000000e+00> : vector<8xf32>
    %11 = vector.multi_reduction <add>, %10, %cst_5 [1] : vector<8x8xf32> to vector<8xf32>
    %12 = vector.shape_cast %11 : vector<8xf32> to vector<8x1xf32>
    %13 = vector.broadcast %12 : vector<8x1xf32> to vector<8x8xf32>
    %14 = arith.divf %10, %13 : vector<8x8xf32>
    %c0_6 = arith.constant 0 : index
    %c0_7 = arith.constant 0 : index
    %15 = vector.load %arg7[%c0_6, %c0_7] : memref<8x8xf32, #tpu.memory_space<vmem>>, vector<8x8xf32>
    tpu.vector_store %arg7[%c0_6, %c0_7], %14 {strides = array<i32>} : memref<8x8xf32, #tpu.memory_space<vmem>>, vector<8x8xf32>,
    %16 = vector.shape_cast %14 : vector<8x8xf32> to vector<8x8x1xf32>
    %17 = vector.broadcast %16 : vector<8x8x1xf32> to vector<8x8x32xf32>
    %18 = arith.mulf %17, %1 : vector<8x8x32xf32>
    %cst_8 = arith.constant dense<0.000000e+00> : vector<8x32xf32>
    %19 = vector.multi_reduction <add>, %18, %cst_8 [1] : vector<8x8x32xf32> to vector<8x32xf32>
    %c0_9 = arith.constant 0 : index
    %c0_10 = arith.constant 0 : index
    %20 = vector.load %arg3[%c0_9, %c0_10] : memref<32x32xf32, #tpu.memory_space<vmem>>, vector<32x32xf32>
    %cst_11 = arith.constant dense<0.000000e+00> : vector<8x32xf32>
    %21 = tpu.matmul %19, %20, %cst_11 {dimension_numbers = #tpu.dot_dimension_numbers<[1], [0], [0], [1], [0, 0, 1, 1], [], []>} : vector<8x32xf32>, vector<32x32xf32>, vector<8x32xf32> -> vector<8x32xf32>
    %c0_12 = arith.constant 0 : index
    %c0_13 = arith.constant 0 : index
    %22 = vector.load %arg4[%c0_12, %c0_13] : memref<32x32xf32, #tpu.memory_space<vmem>>, vector<32x32xf32>
    %cst_14 = arith.constant dense<0.000000e+00> : vector<8x32xf32>
    %23 = tpu.matmul %0, %22, %cst_14 {dimension_numbers = #tpu.dot_dimension_numbers<[1], [0], [0], [1], [0, 0, 1, 1], [], []>} : vector<8x32xf32>, vector<32x32xf32>, vector<8x32xf32> -> vector<8x32xf32>
    %24 = arith.addf %21, %23 : vector<8x32xf32>
    %c0_15 = arith.constant 0 : index
    %c0_16 = arith.constant 0 : index
    %25 = vector.load %arg5[%c0_15, %c0_16] : memref<1x32xf32, #tpu.memory_space<vmem>>, vector<1x32xf32>
    %26 = vector.broadcast %25 : vector<1x32xf32> to vector<8x32xf32>
    %27 = arith.addf %24, %26 : vector<8x32xf32>
    %cst_17 = arith.constant 0.000000e+00 : f32
    %28 = vector.broadcast %cst_17 : f32 to vector<8x32xf32>
    %29 = arith.maximumf %27, %28 : vector<8x32xf32>
    %c0_18 = arith.constant 0 : index
    %c0_19 = arith.constant 0 : index
    %30 = vector.load %arg6[%c0_18, %c0_19] : memref<8x32xf32, #tpu.memory_space<vmem>>, vector<8x32xf32>
    tpu.vector_store %arg6[%c0_18, %c0_19], %29 {strides = array<i32>} : memref<8x32xf32, #tpu.memory_space<vmem>>, vector<8x32xf32>,
    return
  }
  func.func @transform_0(%arg0: i32) -> (i32, i32) {
    %c0_i32 = arith.constant 0 : i32
    %c0_i32_0 = arith.constant 0 : i32
    return %arg0, %c0_i32 : i32, i32
  }
  func.func @transform_1(%arg0: i32) -> (i32, i32, i32) {
    %c0_i32 = arith.constant 0 : i32
    %c0_i32_0 = arith.constant 0 : i32
    %c0_i32_1 = arith.constant 0 : i32
    return %arg0, %c0_i32, %c0_i32_0 : i32, i32, i32
  }
  func.func @transform_2(%arg0: i32) -> (i32, i32) {
    %c0_i32 = arith.constant 0 : i32
    %c0_i32_0 = arith.constant 0 : i32
    %c0_i32_1 = arith.constant 0 : i32
    return %c0_i32, %c0_i32_0 : i32, i32
  }
  func.func @transform_3(%arg0: i32) -> (i32, i32) {
    %c0_i32 = arith.constant 0 : i32
    %c0_i32_0 = arith.constant 0 : i32
    %c0_i32_1 = arith.constant 0 : i32
    return %c0_i32, %c0_i32_0 : i32, i32
  }
  func.func @transform_4(%arg0: i32) -> (i32, i32) {
    %c0_i32 = arith.constant 0 : i32
    %c0_i32_0 = arith.constant 0 : i32
    %c0_i32_1 = arith.constant 0 : i32
    return %c0_i32, %c0_i32_0 : i32, i32
  }
  func.func @transform_5(%arg0: i32) -> (i32, i32) {
    %c0_i32 = arith.constant 0 : i32
    %c0_i32_0 = arith.constant 0 : i32
    return %arg0, %c0_i32 : i32, i32
  }
  func.func @transform_6(%arg0: i32) -> (i32, i32) {
    %c0_i32 = arith.constant 0 : i32
    %c0_i32_0 = arith.constant 0 : i32
    return %arg0, %c0_i32 : i32, i32
  }
}

</mosaic_0001>

<llo_original>
// kernel: tpu_custom_call.1
$region0: #{tpu_custom_call.1}
  #allocation0 [shape = 'u32[]', space=smem, size = 0x4, offset = 0x4, fixed_abs, tag = 'smem constant byte address 0x4 - core index']
  #allocation1 [shape = 'u32[72,128]{1,0:T(1,128)}', space=vmem, size = 0x9000, scoped, tag = 'internal scratch']
  %s0 = inlined_call_operand.hbm [shape: f32[16,32], index: 0, kind: input, shape index: {}]
  %s1 = inlined_call_operand.hbm [shape: f32[16,8,32], index: 1, kind: input, shape index: {}]
  %s2 = inlined_call_operand.hbm [shape: f32[32,32], index: 2, kind: input, shape index: {}]
  %s3 = inlined_call_operand.hbm [shape: f32[32,32], index: 3, kind: input, shape index: {}]
  %s4 = inlined_call_operand.vmem [shape: f32[1,32], index: 4, kind: input, shape index: {}]
  %s5 = inlined_call_operand.hbm [shape: f32[16,32], index: 5, kind: output, shape index: {0}]
  %s6 = inlined_call_operand.vmem [shape: f32[16,8], index: 6, kind: output, shape index: {1}]
  %7 = xla_tuple %s5, %s6
  %s8 = sld [smem:[#allocation0]]
  $region77: #{tpu_custom_call.1} parent=0
    _
  %s10 = ssub.s32 1, %s8
  %s11 = scalar_select 0, %s10, %s8
  $region1: #{tpu_custom_call.1} parent=0
    #allocation2 [shape = 'u8[8192]{0}', space=vmem, size = 0x2000, scoped, tag = 'input window, operand 0']
    #allocation3 [shape = 's32[2]{0}', space=sflag, size = 0x8, scoped, tag = 'scoped memory for tpu_custom_call.1']
    #allocation4 [shape = 's32[2]{0}', space=sflag, size = 0x8, scoped, tag = 'scoped memory for tpu_custom_call.1']
    #allocation5 [shape = 'u8[65536]{0}', space=vmem, size = 0x10000, scoped, tag = 'input window, operand 1']
    #allocation6 [shape = 's32[2]{0}', space=sflag, size = 0x8, scoped, tag = 'scoped memory for tpu_custom_call.1']
    #allocation7 [shape = 'u8[16384]{0}', space=vmem, size = 0x4000, scoped, tag = 'input window, operand 2, single buffered']
    #allocation8 [shape = 'u8[16384]{0}', space=vmem, size = 0x4000, scoped, tag = 'input window, operand 3, single buffered']
    #allocation9 [shape = 's32[1]{0}', space=sflag, size = 0x4, scoped, tag = 'scoped memory for tpu_custom_call.1']
    #allocation10 [shape = 'u8[8192]{0}', space=vmem, size = 0x2000, scoped, tag = 'output window, operand 0']
    %12 = vsyncpa [#allocation3], 0
    %s13 = scalar_lea.sflag [#allocation3], 1
    %14 = vsyncpa %s13, 0
    %15 = vsyncpa [#allocation6], 0
    %s16 = scalar_lea.sflag [#allocation6], 1
    %17 = vsyncpa %s16, 0
    %18 = vsyncpa [#allocation9], 0
    %19 = vsyncpa [#allocation4], 0
    %s20 = scalar_lea.sflag [#allocation4], 1
    %21 = vsyncpa %s20, 0
    loop: start=0, step=1, limit=4
    $region2: #{tpu_custom_call.1} parent=1 // loop_pre_header
      _
    $region3: #{tpu_custom_call.1} parent=1 // loop_header
      %s23 = sphi 0, %s27
      %p24 = scmp.ge.s32.totalorder %s23, 4
      %s33 = sphi 0, %s35
      %s36 = sphi 0, %s33
      %s37 = sphi 0, %s36
      %s53 = sphi 0, %s37
      %s59 = sphi 0, %s61
      %s62 = sphi 0, %s59
      %s63 = sphi 0, %s62
      %s79 = sphi 0, %s63
      %s83 = sphi 0, %s83
      %s85 = sphi 0, %s83
      %s86 = sphi 0, %s85
      %s100 = sphi 0, %s86
      %s104 = sphi 0, %s104
      %s106 = sphi 0, %s104
      %s107 = sphi 0, %s106
      %s121 = sphi 0, %s107
      %s125 = sphi 0, %s125
      %s127 = sphi 0, %s125
      %s128 = sphi 0, %s127
      %s142 = sphi 0, %s128
      %s148 = sphi 0, %s150
      %s151 = sphi 0, %s148
      %s152 = sphi 0, %s151
      %s168 = sphi 0, %s152
      %s174 = sphi 0, %s176
      %s177 = sphi 0, %s174
      %s178 = sphi 0, %s177
      %s194 = sphi 0, %s178
    $region4: #{tpu_custom_call.1} parent=1 // loop_header_branch
      %26 = sbr.rel (%p24) target = $region8
    $region5: #{tpu_custom_call.1} parent=1 // loop_body
      %s28 = ssub.s32 %s23, 1
      %s29 = ssub.s32 %s23, 2
      %s30 = sadd.s32 %s23, 1
      %s31 = ssub.s32 %s23, %s30
      %p32 = scmp.eq.s32.totalorder %s31, 0
      %s34 = sadd.s32 %s33, 1
      %s35 = scalar_select %p32, %s33, %s34
      %p38 = pneg %p32
      %p39 = scmp.eq.s32.totalorder %s23, 1
      %p40 = por %p38, %p39
      %p41 = scmp.ne.s32.totalorder %s33, %s36
      %p42 = scmp.eq.s32.totalorder %s23, 0
      %p43 = por %p41, %p42
      %p44 = scmp.ne.s32.totalorder %s33, %s36
      %p45 = scmp.eq.s32.totalorder %s28, 1
      %p46 = por %p44, %p45
      %p47 = scmp.ne.s32.totalorder %s36, %s37
      %p48 = scmp.eq.s32.totalorder %s28, 0
      %p49 = por %p47, %p48
      %p50 = scmp.ne.s32.totalorder %s36, %s37
      %p51 = scmp.eq.s32.totalorder %s29, 1
      %p52 = por %p50, %p51
      %p54 = scmp.ne.s32.totalorder %s37, %s53
      %p55 = scmp.eq.s32.totalorder %s29, 0
      %p56 = por %p54, %p55
      %s57 = ssub.s32 %s23, %s30
      %p58 = scmp.eq.s32.totalorder %s57, 0
      %s60 = sadd.s32 %s59, 1
      %s61 = scalar_select %p58, %s59, %s60
      %p64 = pneg %p58
      %p65 = scmp.eq.s32.totalorder %s23, 1
      %p66 = por %p64, %p65
      %p67 = scmp.ne.s32.totalorder %s59, %s62
      %p68 = scmp.eq.s32.totalorder %s23, 0
      %p69 = por %p67, %p68
      %p70 = scmp.ne.s32.totalorder %s59, %s62
      %p71 = scmp.eq.s32.totalorder %s28, 1
      %p72 = por %p70, %p71
      %p73 = scmp.ne.s32.totalorder %s62, %s63
      %p74 = scmp.eq.s32.totalorder %s28, 0
      %p75 = por %p73, %p74
      %p76 = scmp.ne.s32.totalorder %s62, %s63
      %p77 = scmp.eq.s32.totalorder %s29, 1
      %p78 = por %p76, %p77
      %p80 = scmp.ne.s32.totalorder %s63, %s79
      %p81 = scmp.eq.s32.totalorder %s29, 0
      %p82 = por %p80, %p81
      %s84 = sadd.s32 %s83, 1
      %p87 = scmp.eq.s32.totalorder %s23, 1
      %p88 = scmp.ne.s32.totalorder %s83, %s85
      %p89 = scmp.eq.s32.totalorder %s23, 0
      %p90 = por %p88, %p89
      %p91 = scmp.ne.s32.totalorder %s83, %s85
      %p92 = scmp.eq.s32.totalorder %s28, 1
      %p93 = por %p91, %p92
      %p94 = scmp.ne.s32.totalorder %s85, %s86
      %p95 = scmp.eq.s32.totalorder %s28, 0
      %p96 = por %p94, %p95
      %p97 = scmp.ne.s32.totalorder %s85, %s86
      %p98 = scmp.eq.s32.totalorder %s29, 1
      %p99 = por %p97, %p98
      %p101 = scmp.ne.s32.totalorder %s86, %s100
      %p102 = scmp.eq.s32.totalorder %s29, 0
      %p103 = por %p101, %p102
      %s105 = sadd.s32 %s104, 1
      %p108 = scmp.eq.s32.totalorder %s23, 1
      %p109 = scmp.ne.s32.totalorder %s104, %s106
      %p110 = scmp.eq.s32.totalorder %s23, 0
      %p111 = por %p109, %p110
      %p112 = scmp.ne.s32.totalorder %s104, %s106
      %p113 = scmp.eq.s32.totalorder %s28, 1
      %p114 = por %p112, %p113
      %p115 = scmp.ne.s32.totalorder %s106, %s107
      %p116 = scmp.eq.s32.totalorder %s28, 0
      %p117 = por %p115, %p116
      %p118 = scmp.ne.s32.totalorder %s106, %s107
      %p119 = scmp.eq.s32.totalorder %s29, 1
      %p120 = por %p118, %p119
      %p122 = scmp.ne.s32.totalorder %s107, %s121
      %p123 = scmp.eq.s32.totalorder %s29, 0
      %p124 = por %p122, %p123
      %s126 = sadd.s32 %s125, 1
      %p129 = scmp.eq.s32.totalorder %s23, 1
      %p130 = scmp.ne.s32.totalorder %s125, %s127
      %p131 = scmp.eq.s32.totalorder %s23, 0
      %p132 = por %p130, %p131
      %p133 = scmp.ne.s32.totalorder %s125, %s127
      %p134 = scmp.eq.s32.totalorder %s28, 1
      %p135 = por %p133, %p134
      %p136 = scmp.ne.s32.totalorder %s127, %s128
      %p137 = scmp.eq.s32.totalorder %s28, 0
      %p138 = por %p136, %p137
      %p139 = scmp.ne.s32.totalorder %s127, %s128
      %p140 = scmp.eq.s32.totalorder %s29, 1
      %p141 = por %p139, %p140
      %p143 = scmp.ne.s32.totalorder %s128, %s142
      %p144 = scmp.eq.s32.totalorder %s29, 0
      %p145 = por %p143, %p144
      %s146 = ssub.s32 %s23, %s30
      %p147 = scmp.eq.s32.totalorder %s146, 0
      %s149 = sadd.s32 %s148, 1
      %s150 = scalar_select %p147, %s148, %s149
      %p153 = pneg %p147
      %p154 = scmp.eq.s32.totalorder %s23, 1
      %p155 = por %p153, %p154
      %p156 = scmp.ne.s32.totalorder %s148, %s151
      %p157 = scmp.eq.s32.totalorder %s23, 0
      %p158 = por %p156, %p157
      %p159 = scmp.ne.s32.totalorder %s148, %s151
      %p160 = scmp.eq.s32.totalorder %s28, 1
      %p161 = por %p159, %p160
      %p162 = scmp.ne.s32.totalorder %s151, %s152
      %p163 = scmp.eq.s32.totalorder %s28, 0
      %p164 = por %p162, %p163
      %p165 = scmp.ne.s32.totalorder %s151, %s152
      %p166 = scmp.eq.s32.totalorder %s29, 1
      %p167 = por %p165, %p166
      %p169 = scmp.ne.s32.totalorder %s152, %s168
      %p170 = scmp.eq.s32.totalorder %s29, 0
      %p171 = por %p169, %p170
      %s172 = ssub.s32 %s23, %s30
      %p173 = scmp.eq.s32.totalorder %s172, 0
      %s175 = sadd.s32 %s174, 1
      %s176 = scalar_select %p173, %s174, %s175
      %p179 = pneg %p173
      %p180 = scmp.eq.s32.totalorder %s23, 1
      %p181 = por %p179, %p180
      %p182 = scmp.ne.s32.totalorder %s174, %s177
      %p183 = scmp.eq.s32.totalorder %s23, 0
      %p184 = por %p182, %p183
      %p185 = scmp.ne.s32.totalorder %s174, %s177
      %p186 = scmp.eq.s32.totalorder %s28, 1
      %p187 = por %p185, %p186
      %p188 = scmp.ne.s32.totalorder %s177, %s178
      %p189 = scmp.eq.s32.totalorder %s28, 0
      %p190 = por %p188, %p189
      %p191 = scmp.ne.s32.totalorder %s177, %s178
      %p192 = scmp.eq.s32.totalorder %s29, 1
      %p193 = por %p191, %p192
      %p195 = scmp.ne.s32.totalorder %s178, %s194
      %p196 = scmp.eq.s32.totalorder %s29, 0
      %p197 = por %p195, %p196
      %p198 = scmp.le.s32.totalorder 1, %s23
      %p199 = scmp.lt.s32.totalorder %s23, 3
      %p200 = pnand %p198, %p199
      %p201 = pneg %p200
      // Predicated region
      $region9: #{tpu_custom_call.1} parent=5 // pred_check
        _
      $region10: #{tpu_custom_call.1} parent=5 // pred_check_branch
        %203 = sbr.rel (%p200) target = $region12
      $region11: #{tpu_custom_call.1} parent=5 // pred_region
        %s204 = ssub.s32 %s23, 1
        // Predicated region
        $region13: #{tpu_custom_call.1} parent=11 // pred_check
          %p205 = pneg %p96
        $region14: #{tpu_custom_call.1} parent=11 // pred_check_branch
          %207 = sbr.rel (%p205) target = $region16
        $region15: #{tpu_custom_call.1} parent=11 // pred_region
          %209 = vsyncadd [#allocation6], 0
          %s210 = sshll.u32 %s2, 4
          %s211 = int_to_ptr.hbm [resolvable:$true] %s210
          %s212 = sshll.u32 [#allocation7], 4
          %s213 = int_to_ptr.vmem [resolvable:$true] %s212
          %218 = dma.hbm_to_vmem [thread:$0]  %s211, 512, %s213, [#allocation6], 128, 128, 8
        $region16: #{tpu_custom_call.1} parent=11 // pred_fallthru
          _
        // Predicated region
        $region17: #{tpu_custom_call.1} parent=11 // pred_check
          %p219 = pneg %p117
        $region18: #{tpu_custom_call.1} parent=11 // pred_check_branch
          %221 = sbr.rel (%p219) target = $region20
        $region19: #{tpu_custom_call.1} parent=11 // pred_region
          %223 = vsyncadd [#allocation9], 0
          %s224 = sshll.u32 %s3, 4
          %s225 = int_to_ptr.hbm [resolvable:$true] %s224
          %s226 = sshll.u32 [#allocation8], 4
          %s227 = int_to_ptr.vmem [resolvable:$true] %s226
          %232 = dma.hbm_to_vmem [thread:$0]  %s225, 512, %s227, [#allocation9], 128, 128, 8
        $region20: #{tpu_custom_call.1} parent=11 // pred_fallthru
          _
        // Predicated region
        $region21: #{tpu_custom_call.1} parent=11 // pred_check
          %p233 = pneg %p138
        $region22: #{tpu_custom_call.1} parent=11 // pred_check_branch
          %235 = sbr.rel (%p233) target = $region24
        $region23: #{tpu_custom_call.1} parent=11 // pred_region
          _
        $region24: #{tpu_custom_call.1} parent=11 // pred_fallthru
          _
      $region12: #{tpu_custom_call.1} parent=5 // pred_fallthru
        _
      %p236 = scmp.lt.s32.totalorder %s23, 2
      // Predicated region
      $region25: #{tpu_custom_call.1} parent=5 // pred_check
        %p237 = pneg %p236
      $region26: #{tpu_custom_call.1} parent=5 // pred_check_branch
        %239 = sbr.rel (%p237) target = $region28
      $region27: #{tpu_custom_call.1} parent=5 // pred_region
        // Predicated region
        $region29: #{tpu_custom_call.1} parent=27 // pred_check
          %p240 = pneg %p43
        $region30: #{tpu_custom_call.1} parent=27 // pred_check_branch
          %242 = sbr.rel (%p240) target = $region32
        $region31: #{tpu_custom_call.1} parent=27 // pred_region
          %s243 = sand.u32 %s33, 1
          %s244 = scalar_lea.sflag [#allocation3], %s243
          %s245 = sand.u32 %s33, 1
          %s246 = smul.addr %s245, 8
          %s247 = scalar_lea.vmem [#allocation2], %s246
          %249 = vsyncadd %s244, 0
          %s250 = smul.addr %s23, 8
          %s251 = scalar_lea.hbm %s0, %s250
          %s253 = sshll.u32 %s251, 4
          %s254 = int_to_ptr.hbm [resolvable:$true] %s253
          %s255 = sshll.u32 %s247, 4
          %s256 = int_to_ptr.vmem [resolvable:$true] %s255
          %258 = dma.hbm_to_vmem [thread:$0]  %s254, 128, %s256, %s244
        $region32: #{tpu_custom_call.1} parent=27 // pred_fallthru
          _
        // Predicated region
        $region33: #{tpu_custom_call.1} parent=27 // pred_check
          %p259 = pneg %p69
        $region34: #{tpu_custom_call.1} parent=27 // pred_check_branch
          %261 = sbr.rel (%p259) target = $region36
        $region35: #{tpu_custom_call.1} parent=27 // pred_region
          %s262 = sand.u32 %s23, 1
          %s263 = scalar_lea.sflag [#allocation6], %s262
          %s264 = sand.u32 %s59, 1
          %s265 = smul.addr %s264, 64
          %s266 = scalar_lea.vmem [#allocation5], %s265
          %s267 = smul.u32 8, %s23
          %269 = vsyncadd %s263, 0
          %s270 = smul.addr %s267, 8
          %s271 = scalar_lea.hbm %s1, %s270
          %s272 = sshll.u32 %s271, 4
          %s273 = int_to_ptr.hbm [resolvable:$true] %s272
          %s274 = sshll.u32 %s266, 4
          %s275 = int_to_ptr.vmem [resolvable:$true] %s274
          %280 = dma.hbm_to_vmem [thread:$0]  %s273, 1024, %s275, %s263, 128, 128, 8
        $region36: #{tpu_custom_call.1} parent=27 // pred_fallthru
          _
      $region28: #{tpu_custom_call.1} parent=5 // pred_fallthru
        _
      %p281 = scmp.le.s32.totalorder 1, %s23
      %p282 = scmp.lt.s32.totalorder %s23, 3
      %p283 = pnand %p281, %p282
      %p284 = pneg %p283
      // Predicated region
      $region37: #{tpu_custom_call.1} parent=5 // pred_check
        _
      $region38: #{tpu_custom_call.1} parent=5 // pred_check_branch
        %286 = sbr.rel (%p283) target = $region40
      $region39: #{tpu_custom_call.1} parent=5 // pred_region
        %s287 = ssub.s32 %s23, 1
        %s288 = sand.u32 %s36, 1
        %s289 = scalar_lea.sflag [#allocation3], %s288
        %s290 = sand.u32 %s36, 1
        %s291 = smul.addr %s290, 8
        %s292 = scalar_lea.vmem [#allocation2], %s291
        // Predicated region
        $region41: #{tpu_custom_call.1} parent=39 // pred_check
          %p293 = pneg %p49
        $region42: #{tpu_custom_call.1} parent=39 // pred_check_branch
          %295 = sbr.rel (%p293) target = $region44
        $region43: #{tpu_custom_call.1} parent=39 // pred_region
          %297 = dma.done %s289, 128
        $region44: #{tpu_custom_call.1} parent=39 // pred_fallthru
          _
        %s298 = sand.u32 %s28, 1
        %s299 = scalar_lea.sflag [#allocation6], %s298
        %s300 = sand.u32 %s62, 1
        %s301 = smul.addr %s300, 64
        %s302 = scalar_lea.vmem [#allocation5], %s301
        // Predicated region
        $region45: #{tpu_custom_call.1} parent=39 // pred_check
          %p303 = pneg %p75
        $region46: #{tpu_custom_call.1} parent=39 // pred_check_branch
          %305 = sbr.rel (%p303) target = $region48
        $region47: #{tpu_custom_call.1} parent=39 // pred_region
          %307 = dma.done %s299, 1024
        $region48: #{tpu_custom_call.1} parent=39 // pred_fallthru
          _
        // Predicated region
        $region49: #{tpu_custom_call.1} parent=39 // pred_check
          %p308 = pneg %p96
        $region50: #{tpu_custom_call.1} parent=39 // pred_check_branch
          %310 = sbr.rel (%p308) target = $region52
        $region51: #{tpu_custom_call.1} parent=39 // pred_region
          %312 = dma.done [#allocation6], 512
        $region52: #{tpu_custom_call.1} parent=39 // pred_fallthru
          _
        // Predicated region
        $region53: #{tpu_custom_call.1} parent=39 // pred_check
          %p313 = pneg %p117
        $region54: #{tpu_custom_call.1} parent=39 // pred_check_branch
          %315 = sbr.rel (%p313) target = $region56
        $region55: #{tpu_custom_call.1} parent=39 // pred_region
          %317 = dma.done [#allocation9], 512
        $region56: #{tpu_custom_call.1} parent=39 // pred_fallthru
          _
        %s318 = sand.u32 %s36, 1
        %s319 = scalar_lea.sflag [#allocation3], %s318
        %s320 = sand.u32 %s36, 1
        %s321 = smul.addr %s320, 8
        %s322 = scalar_lea.vmem [#allocation2], %s321
        %p323 = pneg %p49
        %p324 = pneg %p46
        %s325 = sand.u32 %s28, 1
        %s326 = scalar_lea.sflag [#allocation6], %s325
        %s327 = sand.u32 %s62, 1
        %s328 = smul.addr %s327, 64
        %s329 = scalar_lea.vmem [#allocation5], %s328
        %p330 = pneg %p75
        %p331 = pneg %p72
        %p332 = pneg %p96
        %p333 = pneg %p93
        %p334 = pneg %p117
        %p335 = pneg %p114
        %p336 = pneg %p138
        %p337 = pneg %p135
        %p338 = pneg %p164
        %p339 = pneg %p161
        %s340 = sand.u32 %s151, 1
        %s341 = scalar_lea.sflag [#allocation4], %s340
        %s342 = sand.u32 %s151, 1
        %s343 = smul.addr %s342, 8
        %s344 = scalar_lea.vmem [#allocation10], %s343
        %p345 = pneg %p190
        %p346 = pneg %p187
        %p347 = scmp.lt.s32.totalorder %s28, 1
        %s348 = scalar_select %p347, %s28, 1
        %s349 = smul.addr %s348, 8
        %s350 = scalar_lea.vmem %s6, %s349
        %s351 = smul.u32 8, %s28
        %p352 = scmp.lt.s32.totalorder %s28, 1
        %s353 = scalar_select %p352, %s28, 1
        %s354 = smul.addr %s353, 8
        %s355 = scalar_lea.vmem %s6, %s354
        %v356 = vld [vmem:[%s292] sm:$0xff]
        %v357 = vld [vmem:[%s302] sm:$0xff]
        %v358 = vld [vmem:[%s302 + $0x8] sm:$0xff]
        %v359 = vld [vmem:[%s302 + $0x10] sm:$0xff]
        %v360 = vld [vmem:[%s302 + $0x18] sm:$0xff]
        %v361 = vld [vmem:[%s302 + $0x20] sm:$0xff]
        %v362 = vld [vmem:[%s302 + $0x28] sm:$0xff]
        %v363 = vld [vmem:[%s302 + $0x30] sm:$0xff]
        %v364 = vld [vmem:[%s302 + $0x38] sm:$0xff]
        %v366 = vrot.slane %v356, 1
        %v367 = vrot.slane %v356, 2
        %v368 = vrot.slane %v356, 3
        %v369 = vrot.slane %v356, 4
        %v370 = vrot.slane %v356, 5
        %v371 = vrot.slane %v356, 6
        %v372 = vrot.slane %v356, 7
        %v373 = vperm.slane %v356, 0
        %v374 = vperm.slane %v366, 0
        %v375 = vperm.slane %v367, 0
        %v376 = vperm.slane %v368, 0
        %v377 = vperm.slane %v369, 0
        %v378 = vperm.slane %v370, 0
        %v379 = vperm.slane %v371, 0
        %v380 = vperm.slane %v372, 0
        %v389 = vmul.f32 %v357, %v373
        %v390 = vmul.f32 %v358, %v374
        %v391 = vmul.f32 %v359, %v375
        %v392 = vmul.f32 %v360, %v376
        %v393 = vmul.f32 %v361, %v377
        %v394 = vmul.f32 %v362, %v378
        %v395 = vmul.f32 %v363, %v379
        %v396 = vmul.f32 %v364, %v380
        %vm397 = vcmask 261120
        %v398 = vsel %vm397, %v389, 0.0
        %399 = vadd.xlane.f32.xlu0 %v398
        %v400 = vpop.xlane.xlu0 %399
        %v401 = vsel %vm397, %v390, 0.0
        %402 = vadd.xlane.f32.xlu0 %v401
        %v403 = vpop.xlane.xlu0 %402
        %v404 = vsel %vm397, %v391, 0.0
        %405 = vadd.xlane.f32.xlu0 %v404
        %v406 = vpop.xlane.xlu0 %405
        %v407 = vsel %vm397, %v392, 0.0
        %408 = vadd.xlane.f32.xlu0 %v407
        %v409 = vpop.xlane.xlu0 %408
        %v410 = vsel %vm397, %v393, 0.0
        %411 = vadd.xlane.f32.xlu0 %v410
        %v412 = vpop.xlane.xlu0 %411
        %v413 = vsel %vm397, %v394, 0.0
        %414 = vadd.xlane.f32.xlu0 %v413
        %v415 = vpop.xlane.xlu0 %414
        %v416 = vsel %vm397, %v395, 0.0
        %417 = vadd.xlane.f32.xlu0 %v416
        %v418 = vpop.xlane.xlu0 %417
        %v419 = vsel %vm397, %v396, 0.0
        %420 = vadd.xlane.f32.xlu0 %v419
        %v421 = vpop.xlane.xlu0 %420
        %v430 = vlaneseq
        %v431 = vand.u32 %v430, 127
        %v432 = vperm.slane %v400, %v431
        %v433 = vperm.slane %v403, %v431
        %v434 = vperm.slane %v406, %v431
        %v435 = vperm.slane %v409, %v431
        %v436 = vperm.slane %v412, %v431
        %v437 = vperm.slane %v415, %v431
        %v438 = vperm.slane %v418, %v431
        %v439 = vperm.slane %v421, %v431
        %vm440 = vcmask 1041409
        %v441 = vsel %vm440, %v433, %v432
        %vm442 = vcmask 1042434
        %v443 = vsel %vm442, %v434, %v441
        %vm444 = vcmask 1043459
        %v445 = vsel %vm444, %v435, %v443
        %vm446 = vcmask 1044484
        %v447 = vsel %vm446, %v436, %v445
        %vm448 = vcmask 1045509
        %v449 = vsel %vm448, %v437, %v447
        %vm450 = vcmask 1046534
        %v451 = vsel %vm450, %v438, %v449
        %vm452 = vcmask 1047559
        %v453 = vsel %vm452, %v439, %v451
        %vm455 = vcmask 64512
        %v456 = vsel %vm455, %v453, -inf
        %457 = vmax.xlane.f32.xlu0 %v456
        %v458 = vpop.xlane.xlu0 %457
        %v460 = vperm.slane %v458, 0
        %v461 = vperm.slane %v458, 1
        %v462 = vperm.slane %v458, 2
        %v463 = vperm.slane %v458, 3
        %v464 = vperm.slane %v458, 4
        %v465 = vperm.slane %v458, 5
        %v466 = vperm.slane %v458, 6
        %v467 = vperm.slane %v458, 7
        %v476 = vsub.f32 %v400, %v460
        %v477 = vsub.f32 %v403, %v461
        %v478 = vsub.f32 %v406, %v462
        %v479 = vsub.f32 %v409, %v463
        %v480 = vsub.f32 %v412, %v464
        %v481 = vsub.f32 %v415, %v465
        %v482 = vsub.f32 %v418, %v466
        %v483 = vsub.f32 %v421, %v467
        %v484 = vmul.f32 %v476, 1.442695
        %v485 = vpow.pop %v484
        %v486 = vmul.f32 %v477, 1.442695
        %v487 = vpow.pop %v486
        %v488 = vmul.f32 %v478, 1.442695
        %v489 = vpow.pop %v488
        %v490 = vmul.f32 %v479, 1.442695
        %v491 = vpow.pop %v490
        %v492 = vmul.f32 %v480, 1.442695
        %v493 = vpow.pop %v492
        %v494 = vmul.f32 %v481, 1.442695
        %v495 = vpow.pop %v494
        %v496 = vmul.f32 %v482, 1.442695
        %v497 = vpow.pop %v496
        %v498 = vmul.f32 %v483, 1.442695
        %v499 = vpow.pop %v498
        %508 = vset.pattern.permute.xlu0 0
        %509 = vperm.xlu0 %508, %v485
        %v510 = vpop.permute.xlu0 %509
        %511 = vset.pattern.permute.xlu0 0
        %512 = vperm.xlu0 %511, %v487
        %v513 = vpop.permute.xlu0 %512
        %514 = vset.pattern.permute.xlu0 0
        %515 = vperm.xlu0 %514, %v489
        %v516 = vpop.permute.xlu0 %515
        %517 = vset.pattern.permute.xlu0 0
        %518 = vperm.xlu0 %517, %v491
        %v519 = vpop.permute.xlu0 %518
        %520 = vset.pattern.permute.xlu0 0
        %521 = vperm.xlu0 %520, %v493
        %v522 = vpop.permute.xlu0 %521
        %523 = vset.pattern.permute.xlu0 0
        %524 = vperm.xlu0 %523, %v495
        %v525 = vpop.permute.xlu0 %524
        %526 = vset.pattern.permute.xlu0 0
        %527 = vperm.xlu0 %526, %v497
        %v528 = vpop.permute.xlu0 %527
        %529 = vset.pattern.permute.xlu0 0
        %530 = vperm.xlu0 %529, %v499
        %v531 = vpop.permute.xlu0 %530
        %v532 = vperm.slane %v510, %v431
        %v533 = vperm.slane %v513, %v431
        %v534 = vperm.slane %v516, %v431
        %v535 = vperm.slane %v519, %v431
        %v536 = vperm.slane %v522, %v431
        %v537 = vperm.slane %v525, %v431
        %v538 = vperm.slane %v528, %v431
        %v539 = vperm.slane %v531, %v431
        %v540 = vsel %vm440, %v533, %v532
        %v541 = vsel %vm442, %v534, %v540
        %v542 = vsel %vm444, %v535, %v541
        %v543 = vsel %vm446, %v536, %v542
        %v544 = vsel %vm448, %v537, %v543
        %v545 = vsel %vm450, %v538, %v544
        %v546 = vsel %vm452, %v539, %v545
        %v548 = vsel %vm455, %v546, 0.0
        %549 = vadd.xlane.f32.xlu0 %v548
        %v550 = vpop.xlane.xlu0 %549
        %v552 = vperm.slane %v550, 0
        %v553 = vperm.slane %v550, 1
        %v554 = vperm.slane %v550, 2
        %v555 = vperm.slane %v550, 3
        %v556 = vperm.slane %v550, 4
        %v557 = vperm.slane %v550, 5
        %v558 = vperm.slane %v550, 6
        %v559 = vperm.slane %v550, 7
        %v568 = vrcp.pop %v552
        %v569 = vmul.f32 %v552, %v568
        %v570 = vsub.f32 1.0, %v569
        %v571 = vmul.f32 %v568, %v570
        %v572 = vadd.f32 %v568, %v571
        %vm573 = vweird.f32 %v552
        %vm574 = vweird.f32 %v568
        %vm575 = vmor %vm573, %vm574
        %v576 = vsel %vm575, %v568, %v572
        %v577 = vand.u32 2147483647, %v552
        %vm578 = vcmp.eq.f32.partialorder %v577, 8.507059e+37
        %v579 = vand.u32 %v552, 2147483648
        %v580 = vor.u32 1.1754944e-38, %v579
        %v581 = vsel %vm578, %v580, %v576
        %v582 = vmul.f32 %v485, %v581
        %v583 = vrcp.pop %v553
        %v584 = vmul.f32 %v553, %v583
        %v585 = vsub.f32 1.0, %v584
        %v586 = vmul.f32 %v583, %v585
        %v587 = vadd.f32 %v583, %v586
        %vm588 = vweird.f32 %v553
        %vm589 = vweird.f32 %v583
        %vm590 = vmor %vm588, %vm589
        %v591 = vsel %vm590, %v583, %v587
        %v592 = vand.u32 2147483647, %v553
        %vm593 = vcmp.eq.f32.partialorder %v592, 8.507059e+37
        %v594 = vand.u32 %v553, 2147483648
        %v595 = vor.u32 1.1754944e-38, %v594
        %v596 = vsel %vm593, %v595, %v591
        %v597 = vmul.f32 %v487, %v596
        %v598 = vrcp.pop %v554
        %v599 = vmul.f32 %v554, %v598
        %v600 = vsub.f32 1.0, %v599
        %v601 = vmul.f32 %v598, %v600
        %v602 = vadd.f32 %v598, %v601
        %vm603 = vweird.f32 %v554
        %vm604 = vweird.f32 %v598
        %vm605 = vmor %vm603, %vm604
        %v606 = vsel %vm605, %v598, %v602
        %v607 = vand.u32 2147483647, %v554
        %vm608 = vcmp.eq.f32.partialorder %v607, 8.507059e+37
        %v609 = vand.u32 %v554, 2147483648
        %v610 = vor.u32 1.1754944e-38, %v609
        %v611 = vsel %vm608, %v610, %v606
        %v612 = vmul.f32 %v489, %v611
        %v613 = vrcp.pop %v555
        %v614 = vmul.f32 %v555, %v613
        %v615 = vsub.f32 1.0, %v614
        %v616 = vmul.f32 %v613, %v615
        %v617 = vadd.f32 %v613, %v616
        %vm618 = vweird.f32 %v555
        %vm619 = vweird.f32 %v613
        %vm620 = vmor %vm618, %vm619
        %v621 = vsel %vm620, %v613, %v617
        %v622 = vand.u32 2147483647, %v555
        %vm623 = vcmp.eq.f32.partialorder %v622, 8.507059e+37
        %v624 = vand.u32 %v555, 2147483648
        %v625 = vor.u32 1.1754944e-38, %v624
        %v626 = vsel %vm623, %v625, %v621
        %v627 = vmul.f32 %v491, %v626
        %v628 = vrcp.pop %v556
        %v629 = vmul.f32 %v556, %v628
        %v630 = vsub.f32 1.0, %v629
        %v631 = vmul.f32 %v628, %v630
        %v632 = vadd.f32 %v628, %v631
        %vm633 = vweird.f32 %v556
        %vm634 = vweird.f32 %v628
        %vm635 = vmor %vm633, %vm634
        %v636 = vsel %vm635, %v628, %v632
        %v637 = vand.u32 2147483647, %v556
        %vm638 = vcmp.eq.f32.partialorder %v637, 8.507059e+37
        %v639 = vand.u32 %v556, 2147483648
        %v640 = vor.u32 1.1754944e-38, %v639
        %v641 = vsel %vm638, %v640, %v636
        %v642 = vmul.f32 %v493, %v641
        %v643 = vrcp.pop %v557
        %v644 = vmul.f32 %v557, %v643
        %v645 = vsub.f32 1.0, %v644
        %v646 = vmul.f32 %v643, %v645
        %v647 = vadd.f32 %v643, %v646
        %vm648 = vweird.f32 %v557
        %vm649 = vweird.f32 %v643
        %vm650 = vmor %vm648, %vm649
        %v651 = vsel %vm650, %v643, %v647
        %v652 = vand.u32 2147483647, %v557
        %vm653 = vcmp.eq.f32.partialorder %v652, 8.507059e+37
        %v654 = vand.u32 %v557, 2147483648
        %v655 = vor.u32 1.1754944e-38, %v654
        %v656 = vsel %vm653, %v655, %v651
        %v657 = vmul.f32 %v495, %v656
        %v658 = vrcp.pop %v558
        %v659 = vmul.f32 %v558, %v658
        %v660 = vsub.f32 1.0, %v659
        %v661 = vmul.f32 %v658, %v660
        %v662 = vadd.f32 %v658, %v661
        %vm663 = vweird.f32 %v558
        %vm664 = vweird.f32 %v658
        %vm665 = vmor %vm663, %vm664
        %v666 = vsel %vm665, %v658, %v662
        %v667 = vand.u32 2147483647, %v558
        %vm668 = vcmp.eq.f32.partialorder %v667, 8.507059e+37
        %v669 = vand.u32 %v558, 2147483648
        %v670 = vor.u32 1.1754944e-38, %v669
        %v671 = vsel %vm668, %v670, %v666
        %v672 = vmul.f32 %v497, %v671
        %v673 = vrcp.pop %v559
        %v674 = vmul.f32 %v559, %v673
        %v675 = vsub.f32 1.0, %v674
        %v676 = vmul.f32 %v673, %v675
        %v677 = vadd.f32 %v673, %v676
        %vm678 = vweird.f32 %v559
        %vm679 = vweird.f32 %v673
        %vm680 = vmor %vm678, %vm679
        %v681 = vsel %vm680, %v673, %v677
        %v682 = vand.u32 2147483647, %v559
        %vm683 = vcmp.eq.f32.partialorder %v682, 8.507059e+37
        %v684 = vand.u32 %v559, 2147483648
        %v685 = vor.u32 1.1754944e-38, %v684
        %v686 = vsel %vm683, %v685, %v681
        %v687 = vmul.f32 %v499, %v686
        %696 = vset.pattern.permute.xlu0 0
        %697 = vperm.xlu0 %696, %v582
        %v698 = vpop.permute.xlu0 %697
        %699 = vset.pattern.permute.xlu0 0
        %700 = vperm.xlu0 %699, %v597
        %v701 = vpop.permute.xlu0 %700
        %702 = vset.pattern.permute.xlu0 0
        %703 = vperm.xlu0 %702, %v612
        %v704 = vpop.permute.xlu0 %703
        %705 = vset.pattern.permute.xlu0 0
        %706 = vperm.xlu0 %705, %v627
        %v707 = vpop.permute.xlu0 %706
        %708 = vset.pattern.permute.xlu0 0
        %709 = vperm.xlu0 %708, %v642
        %v710 = vpop.permute.xlu0 %709
        %711 = vset.pattern.permute.xlu0 0
        %712 = vperm.xlu0 %711, %v657
        %v713 = vpop.permute.xlu0 %712
        %714 = vset.pattern.permute.xlu0 0
        %715 = vperm.xlu0 %714, %v672
        %v716 = vpop.permute.xlu0 %715
        %717 = vset.pattern.permute.xlu0 0
        %718 = vperm.xlu0 %717, %v687
        %v719 = vpop.permute.xlu0 %718
        %v720 = vperm.slane %v698, %v431
        %v721 = vperm.slane %v701, %v431
        %v722 = vperm.slane %v704, %v431
        %v723 = vperm.slane %v707, %v431
        %v724 = vperm.slane %v710, %v431
        %v725 = vperm.slane %v713, %v431
        %v726 = vperm.slane %v716, %v431
        %v727 = vperm.slane %v719, %v431
        %v728 = vsel %vm440, %v721, %v720
        %v729 = vsel %vm442, %v722, %v728
        %v730 = vsel %vm444, %v723, %v729
        %v731 = vsel %vm446, %v724, %v730
        %v732 = vsel %vm448, %v725, %v731
        %v733 = vsel %vm450, %v726, %v732
        %v734 = vsel %vm452, %v727, %v733
        %736 = vst.msk [vmem:[%s355] sm:$0xff] %vm455, %v734
        %v745 = vmul.f32 %v698, %v357
        %v746 = vmul.f32 %v701, %v358
        %v747 = vmul.f32 %v704, %v359
        %v748 = vmul.f32 %v707, %v360
        %v749 = vmul.f32 %v710, %v361
        %v750 = vmul.f32 %v713, %v362
        %v751 = vmul.f32 %v716, %v363
        %v752 = vmul.f32 %v719, %v364
        %v753 = vsel %vm397, %v745, 0.0
        %v754 = vrot.slane %v753, 4
        %v755 = vadd.f32 %v753, %v754
        %v756 = vrot.slane %v755, 2
        %v757 = vadd.f32 %v755, %v756
        %v758 = vrot.slane %v757, 1
        %v759 = vadd.f32 %v757, %v758
        %v760 = vsel %vm397, %v746, 0.0
        %v761 = vrot.slane %v760, 4
        %v762 = vadd.f32 %v760, %v761
        %v763 = vrot.slane %v762, 2
        %v764 = vadd.f32 %v762, %v763
        %v765 = vrot.slane %v764, 1
        %v766 = vadd.f32 %v764, %v765
        %v767 = vsel %vm397, %v747, 0.0
        %v768 = vrot.slane %v767, 4
        %v769 = vadd.f32 %v767, %v768
        %v770 = vrot.slane %v769, 2
        %v771 = vadd.f32 %v769, %v770
        %v772 = vrot.slane %v771, 1
        %v773 = vadd.f32 %v771, %v772
        %v774 = vsel %vm397, %v748, 0.0
        %v775 = vrot.slane %v774, 4
        %v776 = vadd.f32 %v774, %v775
        %v777 = vrot.slane %v776, 2
        %v778 = vadd.f32 %v776, %v777
        %v779 = vrot.slane %v778, 1
        %v780 = vadd.f32 %v778, %v779
        %v781 = vsel %vm397, %v749, 0.0
        %v782 = vrot.slane %v781, 4
        %v783 = vadd.f32 %v781, %v782
        %v784 = vrot.slane %v783, 2
        %v785 = vadd.f32 %v783, %v784
        %v786 = vrot.slane %v785, 1
        %v787 = vadd.f32 %v785, %v786
        %v788 = vsel %vm397, %v750, 0.0
        %v789 = vrot.slane %v788, 4
        %v790 = vadd.f32 %v788, %v789
        %v791 = vrot.slane %v790, 2
        %v792 = vadd.f32 %v790, %v791
        %v793 = vrot.slane %v792, 1
        %v794 = vadd.f32 %v792, %v793
        %v795 = vsel %vm397, %v751, 0.0
        %v796 = vrot.slane %v795, 4
        %v797 = vadd.f32 %v795, %v796
        %v798 = vrot.slane %v797, 2
        %v799 = vadd.f32 %v797, %v798
        %v800 = vrot.slane %v799, 1
        %v801 = vadd.f32 %v799, %v800
        %v802 = vsel %vm397, %v752, 0.0
        %v803 = vrot.slane %v802, 4
        %v804 = vadd.f32 %v802, %v803
        %v805 = vrot.slane %v804, 2
        %v806 = vadd.f32 %v804, %v805
        %v807 = vrot.slane %v806, 1
        %v808 = vadd.f32 %v806, %v807
        %v809 = vld [vmem:[#allocation7] sm:$0xff]
        %v810 = vld [vmem:[#allocation7 + $0x8] sm:$0xff]
        %v811 = vld [vmem:[#allocation7 + $0x10] sm:$0xff]
        %v812 = vld [vmem:[#allocation7 + $0x18] sm:$0xff]
        %v813 = vld [vmem:[#allocation8] sm:$0xff]
        %v814 = vld [vmem:[#allocation8 + $0x8] sm:$0xff]
        %v815 = vld [vmem:[#allocation8 + $0x10] sm:$0xff]
        %v816 = vld [vmem:[#allocation8 + $0x18] sm:$0xff]
        %v817 = vsel %vm397, %v356, 0
        %819 = vmatpush.msra.mxu0 0.0
        %820 = vmatpush.msra.mxu0 0.0
        %821 = vmatpush.msra.mxu0 0.0
        %822 = vmatpush.msra.mxu0 0.0
        %823 = vmatpush.msra.mxu0 0.0
        %824 = vmatpush.msra.mxu0 0.0
        %825 = vmatpush.msra.mxu0 0.0
        %826 = vmatpush.msra.mxu0 0.0
        %827 = vmatpush.msra.mxu0 0.0
        %828 = vmatpush.msra.mxu0 0.0
        %829 = vmatpush.msra.mxu0 0.0
        %830 = vmatpush.msra.mxu0 0.0
        %831 = vmatpush.msra.mxu0 %v816
        %832 = vmatpush.msra.mxu0 %v815
        %833 = vmatpush.msra.mxu0 %v814
        %834 = vmatpush.msra.mxu0 %v813
        %835 = vmatmul.f32.gmra.mxu0 %v817
        %v836 = vpop.f32.mrf.mxu0
        %v837 = vadd.f32 0.0, %v836
        %838 = vdwg.mxu0
        %v847 = vsel %vm440, %v766, %v759
        %v848 = vsel %vm442, %v773, %v847
        %v849 = vsel %vm444, %v780, %v848
        %v850 = vsel %vm446, %v787, %v849
        %v851 = vsel %vm448, %v794, %v850
        %v852 = vsel %vm450, %v801, %v851
        %v853 = vsel %vm452, %v808, %v852
        %v854 = vsel %vm397, %v853, 0
        %856 = vmatpush.msra.mxu0 0.0
        %857 = vmatpush.msra.mxu0 0.0
        %858 = vmatpush.msra.mxu0 0.0
        %859 = vmatpush.msra.mxu0 0.0
        %860 = vmatpush.msra.mxu0 0.0
        %861 = vmatpush.msra.mxu0 0.0
        %862 = vmatpush.msra.mxu0 0.0
        %863 = vmatpush.msra.mxu0 0.0
        %864 = vmatpush.msra.mxu0 0.0
        %865 = vmatpush.msra.mxu0 0.0
        %866 = vmatpush.msra.mxu0 0.0
        %867 = vmatpush.msra.mxu0 0.0
        %868 = vmatpush.msra.mxu0 %v812
        %869 = vmatpush.msra.mxu0 %v811
        %870 = vmatpush.msra.mxu0 %v810
        %871 = vmatpush.msra.mxu0 %v809
        %872 = vmatmul.f32.gmra.mxu0 %v854
        %v873 = vpop.f32.mrf.mxu0
        %v874 = vadd.f32 %v837, %v873
        %875 = vdwg.mxu0
        %v876 = vld [vmem:[%s4] sm:$0x1]
        %v878 = vperm.slane %v876, 0
        %v880 = vadd.f32 %v874, %v878
        %v881 = vmax.f32 %v880, 0.0
        %882 = vst.msk [vmem:[%s344] sm:$0xff] %vm397, %v881
        %s883 = sand.u32 %s151, 1
        %s884 = scalar_lea.sflag [#allocation4], %s883
        %s885 = sand.u32 %s151, 1
        %s886 = smul.addr %s885, 8
        %s887 = scalar_lea.vmem [#allocation10], %s886
        %p888 = scmp.lt.s32.totalorder %s28, 1
        %s889 = scalar_select %p888, %s28, 1
        %s890 = smul.addr %s889, 8
        %s891 = scalar_lea.vmem %s6, %s890
        // Predicated region
        $region57: #{tpu_custom_call.1} parent=39 // pred_check
          %p892 = pneg %p161
        $region58: #{tpu_custom_call.1} parent=39 // pred_check_branch
          %894 = sbr.rel (%p892) target = $region60
        $region59: #{tpu_custom_call.1} parent=39 // pred_region
          %896 = vsyncadd %s884, 0
          %s897 = smul.addr %s28, 8
          %s898 = scalar_lea.hbm %s5, %s897
          %s900 = sshll.u32 %s887, 4
          %s901 = int_to_ptr.vmem [resolvable:$true] %s900
          %s902 = sshll.u32 %s898, 4
          %s903 = int_to_ptr.hbm [resolvable:$true] %s902
          %905 = dma.vmem_to_hbm [thread:$0]  %s901, 128, %s903, %s884
        $region60: #{tpu_custom_call.1} parent=39 // pred_fallthru
          _
        // Predicated region
        $region61: #{tpu_custom_call.1} parent=39 // pred_check
          %p906 = pneg %p187
        $region62: #{tpu_custom_call.1} parent=39 // pred_check_branch
          %908 = sbr.rel (%p906) target = $region64
        $region63: #{tpu_custom_call.1} parent=39 // pred_region
          _
        $region64: #{tpu_custom_call.1} parent=39 // pred_fallthru
          _
      $region40: #{tpu_custom_call.1} parent=5 // pred_fallthru
        _
      %p909 = scmp.le.s32.totalorder 2, %s23
      // Predicated region
      $region65: #{tpu_custom_call.1} parent=5 // pred_check
        %p910 = pneg %p909
      $region66: #{tpu_custom_call.1} parent=5 // pred_check_branch
        %912 = sbr.rel (%p910) target = $region68
      $region67: #{tpu_custom_call.1} parent=5 // pred_region
        %s913 = ssub.s32 %s23, 2
        // Predicated region
        $region69: #{tpu_custom_call.1} parent=67 // pred_check
          %p914 = pneg %p167
        $region70: #{tpu_custom_call.1} parent=67 // pred_check_branch
          %916 = sbr.rel (%p914) target = $region72
        $region71: #{tpu_custom_call.1} parent=67 // pred_region
          %s917 = sand.u32 %s152, 1
          %s918 = scalar_lea.sflag [#allocation4], %s917
          %s919 = sand.u32 %s152, 1
          %s920 = smul.addr %s919, 8
          %s921 = scalar_lea.vmem [#allocation10], %s920
          %923 = dma.done %s918, 128
        $region72: #{tpu_custom_call.1} parent=67 // pred_fallthru
          _
        // Predicated region
        $region73: #{tpu_custom_call.1} parent=67 // pred_check
          %p924 = pneg %p193
        $region74: #{tpu_custom_call.1} parent=67 // pred_check_branch
          %926 = sbr.rel (%p924) target = $region76
        $region75: #{tpu_custom_call.1} parent=67 // pred_region
          %p927 = scmp.lt.s32.totalorder %s29, 1
          %s928 = scalar_select %p927, %s29, 1
          %s929 = smul.addr %s928, 8
          %s930 = scalar_lea.vmem %s6, %s929
        $region76: #{tpu_custom_call.1} parent=67 // pred_fallthru
          _
      $region68: #{tpu_custom_call.1} parent=5 // pred_fallthru
        _
    $region6: #{tpu_custom_call.1} parent=1 // loop_footer
      %s27 = sadd.s32 1, %s23
    $region7: #{tpu_custom_call.1} parent=1 // loop_footer_branch
      %22 = sbr.rel target = $region3
    $region8: #{tpu_custom_call.1} parent=1 // loop_exit
      _
    %931 = vsyncpa [#allocation3], 1
    %s932 = scalar_lea.sflag [#allocation3], 1
    %933 = vsyncpa %s932, 1
    %934 = vsyncpa [#allocation6], 1
    %s935 = scalar_lea.sflag [#allocation6], 1
    %936 = vsyncpa %s935, 1
    %937 = vsyncpa [#allocation9], 1
    %938 = vsyncpa [#allocation4], 1
    %s939 = scalar_lea.sflag [#allocation4], 1
    %940 = vsyncpa %s939, 1

// kernel: tpu_custom_call.1
$region0: #{tpu_custom_call.1}
  #allocation0 [shape = 'u32[]', space=smem, size = 0x4, offset = 0x4, fixed_abs, tag = 'smem constant byte address 0x4 - core index']
  #allocation1 [shape = 'u32[72,128]{1,0:T(1,128)}', space=vmem, size = 0x9000, scoped, tag = 'internal scratch']
  %s0 = inlined_call_operand.hbm [shape: f32[16,32], index: 0, kind: input, shape index: {}]
  %s1 = inlined_call_operand.hbm [shape: f32[16,8,32], index: 1, kind: input, shape index: {}]
  %s2 = inlined_call_operand.hbm [shape: f32[32,32], index: 2, kind: input, shape index: {}]
  %s3 = inlined_call_operand.hbm [shape: f32[32,32], index: 3, kind: input, shape index: {}]
  %s4 = inlined_call_operand.vmem [shape: f32[1,32], index: 4, kind: input, shape index: {}]
  %s5 = inlined_call_operand.hbm [shape: f32[16,32], index: 5, kind: output, shape index: {0}]
  %s6 = inlined_call_operand.vmem [shape: f32[16,8], index: 6, kind: output, shape index: {1}]
  %7 = xla_tuple %s5, %s6
  %s8 = sld [smem:[#allocation0]]
  $region77: #{tpu_custom_call.1} parent=0
    _
  %s10 = ssub.s32 1, %s8
  %s11 = scalar_select 0, %s10, %s8
  $region1: #{tpu_custom_call.1} parent=0
    #allocation2 [shape = 'u8[8192]{0}', space=vmem, size = 0x2000, scoped, tag = 'input window, operand 0']
    #allocation3 [shape = 's32[2]{0}', space=sflag, size = 0x8, scoped, tag = 'scoped memory for tpu_custom_call.1']
    #allocation4 [shape = 's32[2]{0}', space=sflag, size = 0x8, scoped, tag = 'scoped memory for tpu_custom_call.1']
    #allocation5 [shape = 'u8[65536]{0}', space=vmem, size = 0x10000, scoped, tag = 'input window, operand 1']
    #allocation6 [shape = 's32[2]{0}', space=sflag, size = 0x8, scoped, tag = 'scoped memory for tpu_custom_call.1']
    #allocation7 [shape = 'u8[16384]{0}', space=vmem, size = 0x4000, scoped, tag = 'input window, operand 2, single buffered']
    #allocation8 [shape = 'u8[16384]{0}', space=vmem, size = 0x4000, scoped, tag = 'input window, operand 3, single buffered']
    #allocation9 [shape = 's32[1]{0}', space=sflag, size = 0x4, scoped, tag = 'scoped memory for tpu_custom_call.1']
    #allocation10 [shape = 'u8[8192]{0}', space=vmem, size = 0x2000, scoped, tag = 'output window, operand 0']
    %12 = vsyncpa [#allocation3], 0
    %s13 = scalar_lea.sflag [#allocation3], 1
    %14 = vsyncpa %s13, 0
    %15 = vsyncpa [#allocation6], 0
    %s16 = scalar_lea.sflag [#allocation6], 1
    %17 = vsyncpa %s16, 0
    %18 = vsyncpa [#allocation9], 0
    %19 = vsyncpa [#allocation4], 0
    %s20 = scalar_lea.sflag [#allocation4], 1
    %21 = vsyncpa %s20, 0
    loop: start=0, step=1, limit=4
    $region2: #{tpu_custom_call.1} parent=1 // loop_pre_header
      _
    $region3: #{tpu_custom_call.1} parent=1 // loop_header
      %s23 = sphi 0, %s27
      %p24 = scmp.ge.s32.totalorder %s23, 4
      %s33 = sphi 0, %s35
      %s36 = sphi 0, %s33
      %s37 = sphi 0, %s36
      %s53 = sphi 0, %s37
      %s59 = sphi 0, %s61
      %s62 = sphi 0, %s59
      %s63 = sphi 0, %s62
      %s79 = sphi 0, %s63
      %s83 = sphi 0, %s83
      %s85 = sphi 0, %s83
      %s86 = sphi 0, %s85
      %s100 = sphi 0, %s86
      %s104 = sphi 0, %s104
      %s106 = sphi 0, %s104
      %s107 = sphi 0, %s106
      %s121 = sphi 0, %s107
      %s125 = sphi 0, %s125
      %s127 = sphi 0, %s125
      %s128 = sphi 0, %s127
      %s142 = sphi 0, %s128
      %s148 = sphi 0, %s150
      %s151 = sphi 0, %s148
      %s152 = sphi 0, %s151
      %s168 = sphi 0, %s152
      %s174 = sphi 0, %s176
      %s177 = sphi 0, %s174
      %s178 = sphi 0, %s177
      %s194 = sphi 0, %s178
    $region4: #{tpu_custom_call.1} parent=1 // loop_header_branch
      %26 = sbr.rel (%p24) target = $region8
    $region5: #{tpu_custom_call.1} parent=1 // loop_body
      %s28 = ssub.s32 %s23, 1
      %s29 = ssub.s32 %s23, 2
      %s30 = sadd.s32 %s23, 1
      %s31 = ssub.s32 %s23, %s30
      %p32 = scmp.eq.s32.totalorder %s31, 0
      %s34 = sadd.s32 %s33, 1
      %s35 = scalar_select %p32, %s33, %s34
      %p38 = pneg %p32
      %p39 = scmp.eq.s32.totalorder %s23, 1
      %p40 = por %p38, %p39
      %p41 = scmp.ne.s32.totalorder %s33, %s36
      %p42 = scmp.eq.s32.totalorder %s23, 0
      %p43 = por %p41, %p42
      %p44 = scmp.ne.s32.totalorder %s33, %s36
      %p45 = scmp.eq.s32.totalorder %s28, 1
      %p46 = por %p44, %p45
      %p47 = scmp.ne.s32.totalorder %s36, %s37
      %p48 = scmp.eq.s32.totalorder %s28, 0
      %p49 = por %p47, %p48
      %p50 = scmp.ne.s32.totalorder %s36, %s37
      %p51 = scmp.eq.s32.totalorder %s29, 1
      %p52 = por %p50, %p51
      %p54 = scmp.ne.s32.totalorder %s37, %s53
      %p55 = scmp.eq.s32.totalorder %s29, 0
      %p56 = por %p54, %p55
      %s57 = ssub.s32 %s23, %s30
      %p58 = scmp.eq.s32.totalorder %s57, 0
      %s60 = sadd.s32 %s59, 1
      %s61 = scalar_select %p58, %s59, %s60
      %p64 = pneg %p58
      %p65 = scmp.eq.s32.totalorder %s23, 1
      %p66 = por %p64, %p65
      %p67 = scmp.ne.s32.totalorder %s59, %s62
      %p68 = scmp.eq.s32.totalorder %s23, 0
      %p69 = por %p67, %p68
      %p70 = scmp.ne.s32.totalorder %s59, %s62
      %p71 = scmp.eq.s32.totalorder %s28, 1
      %p72 = por %p70, %p71
      %p73 = scmp.ne.s32.totalorder %s62, %s63
      %p74 = scmp.eq.s32.totalorder %s28, 0
      %p75 = por %p73, %p74
      %p76 = scmp.ne.s32.totalorder %s62, %s63
      %p77 = scmp.eq.s32.totalorder %s29, 1
      %p78 = por %p76, %p77
      %p80 = scmp.ne.s32.totalorder %s63, %s79
      %p81 = scmp.eq.s32.totalorder %s29, 0
      %p82 = por %p80, %p81
      %s84 = sadd.s32 %s83, 1
      %p87 = scmp.eq.s32.totalorder %s23, 1
      %p88 = scmp.ne.s32.totalorder %s83, %s85
      %p89 = scmp.eq.s32.totalorder %s23, 0
      %p90 = por %p88, %p89
      %p91 = scmp.ne.s32.totalorder %s83, %s85
      %p92 = scmp.eq.s32.totalorder %s28, 1
      %p93 = por %p91, %p92
      %p94 = scmp.ne.s32.totalorder %s85, %s86
      %p95 = scmp.eq.s32.totalorder %s28, 0
      %p96 = por %p94, %p95
      %p97 = scmp.ne.s32.totalorder %s85, %s86
      %p98 = scmp.eq.s32.totalorder %s29, 1
      %p99 = por %p97, %p98
      %p101 = scmp.ne.s32.totalorder %s86, %s100
      %p102 = scmp.eq.s32.totalorder %s29, 0
      %p103 = por %p101, %p102
      %s105 = sadd.s32 %s104, 1
      %p108 = scmp.eq.s32.totalorder %s23, 1
      %p109 = scmp.ne.s32.totalorder %s104, %s106
      %p110 = scmp.eq.s32.totalorder %s23, 0
      %p111 = por %p109, %p110
      %p112 = scmp.ne.s32.totalorder %s104, %s106
      %p113 = scmp.eq.s32.totalorder %s28, 1
      %p114 = por %p112, %p113
      %p115 = scmp.ne.s32.totalorder %s106, %s107
      %p116 = scmp.eq.s32.totalorder %s28, 0
      %p117 = por %p115, %p116
      %p118 = scmp.ne.s32.totalorder %s106, %s107
      %p119 = scmp.eq.s32.totalorder %s29, 1
      %p120 = por %p118, %p119
      %p122 = scmp.ne.s32.totalorder %s107, %s121
      %p123 = scmp.eq.s32.totalorder %s29, 0
      %p124 = por %p122, %p123
      %s126 = sadd.s32 %s125, 1
      %p129 = scmp.eq.s32.totalorder %s23, 1
      %p130 = scmp.ne.s32.totalorder %s125, %s127
      %p131 = scmp.eq.s32.totalorder %s23, 0
      %p132 = por %p130, %p131
      %p133 = scmp.ne.s32.totalorder %s125, %s127
      %p134 = scmp.eq.s32.totalorder %s28, 1
      %p135 = por %p133, %p134
      %p136 = scmp.ne.s32.totalorder %s127, %s128
      %p137 = scmp.eq.s32.totalorder %s28, 0
      %p138 = por %p136, %p137
      %p139 = scmp.ne.s32.totalorder %s127, %s128
      %p140 = scmp.eq.s32.totalorder %s29, 1
      %p141 = por %p139, %p140
      %p143 = scmp.ne.s32.totalorder %s128, %s142
      %p144 = scmp.eq.s32.totalorder %s29, 0
      %p145 = por %p143, %p144
      %s146 = ssub.s32 %s23, %s30
      %p147 = scmp.eq.s32.totalorder %s146, 0
      %s149 = sadd.s32 %s148, 1
      %s150 = scalar_select %p147, %s148, %s149
      %p153 = pneg %p147
      %p154 = scmp.eq.s32.totalorder %s23, 1
      %p155 = por %p153, %p154
      %p156 = scmp.ne.s32.totalorder %s148, %s151
      %p157 = scmp.eq.s32.totalorder %s23, 0
      %p158 = por %p156, %p157
      %p159 = scmp.ne.s32.totalorder %s148, %s151
      %p160 = scmp.eq.s32.totalorder %s28, 1
      %p161 = por %p159, %p160
      %p162 = scmp.ne.s32.totalorder %s151, %s152
      %p163 = scmp.eq.s32.totalorder %s28, 0
      %p164 = por %p162, %p163
      %p165 = scmp.ne.s32.totalorder %s151, %s152
      %p166 = scmp.eq.s32.totalorder %s29, 1
      %p167 = por %p165, %p166
      %p169 = scmp.ne.s32.totalorder %s152, %s168
      %p170 = scmp.eq.s32.totalorder %s29, 0
      %p171 = por %p169, %p170
      %s172 = ssub.s32 %s23, %s30
      %p173 = scmp.eq.s32.totalorder %s172, 0
      %s175 = sadd.s32 %s174, 1
      %s176 = scalar_select %p173, %s174, %s175
      %p179 = pneg %p173
      %p180 = scmp.eq.s32.totalorder %s23, 1
      %p181 = por %p179, %p180
      %p182 = scmp.ne.s32.totalorder %s174, %s177
      %p183 = scmp.eq.s32.totalorder %s23, 0
      %p184 = por %p182, %p183
      %p185 = scmp.ne.s32.totalorder %s174, %s177
      %p186 = scmp.eq.s32.totalorder %s28, 1
      %p187 = por %p185, %p186
      %p188 = scmp.ne.s32.totalorder %s177, %s178
      %p189 = scmp.eq.s32.totalorder %s28, 0
      %p190 = por %p188, %p189
      %p191 = scmp.ne.s32.totalorder %s177, %s178
      %p192 = scmp.eq.s32.totalorder %s29, 1
      %p193 = por %p191, %p192
      %p195 = scmp.ne.s32.totalorder %s178, %s194
      %p196 = scmp.eq.s32.totalorder %s29, 0
      %p197 = por %p195, %p196
      %p198 = scmp.le.s32.totalorder 1, %s23
      %p199 = scmp.lt.s32.totalorder %s23, 3
      %p200 = pnand %p198, %p199
      %p201 = pneg %p200
      // Predicated region
      $region9: #{tpu_custom_call.1} parent=5 // pred_check
        _
      $region10: #{tpu_custom_call.1} parent=5 // pred_check_branch
        %203 = sbr.rel (%p200) target = $region12
      $region11: #{tpu_custom_call.1} parent=5 // pred_region
        %s204 = ssub.s32 %s23, 1
        // Predicated region
        $region13: #{tpu_custom_call.1} parent=11 // pred_check
          %p205 = pneg %p96
        $region14: #{tpu_custom_call.1} parent=11 // pred_check_branch
          %207 = sbr.rel (%p205) target = $region16
        $region15: #{tpu_custom_call.1} parent=11 // pred_region
          %209 = vsyncadd [#allocation6], 0
          %s210 = sshll.u32 %s2, 4
          %s211 = int_to_ptr.hbm [resolvable:$true] %s210
          %s212 = sshll.u32 [#allocation7], 4
          %s213 = int_to_ptr.vmem [resolvable:$true] %s212
          %218 = dma.hbm_to_vmem [thread:$0]  %s211, 512, %s213, [#allocation6], 128, 128, 8
        $region16: #{tpu_custom_call.1} parent=11 // pred_fallthru
          _
        // Predicated region
        $region17: #{tpu_custom_call.1} parent=11 // pred_check
          %p219 = pneg %p117
        $region18: #{tpu_custom_call.1} parent=11 // pred_check_branch
          %221 = sbr.rel (%p219) target = $region20
        $region19: #{tpu_custom_call.1} parent=11 // pred_region
          %223 = vsyncadd [#allocation9], 0
          %s224 = sshll.u32 %s3, 4
          %s225 = int_to_ptr.hbm [resolvable:$true] %s224
          %s226 = sshll.u32 [#allocation8], 4
          %s227 = int_to_ptr.vmem [resolvable:$true] %s226
          %232 = dma.hbm_to_vmem [thread:$0]  %s225, 512, %s227, [#allocation9], 128, 128, 8
        $region20: #{tpu_custom_call.1} parent=11 // pred_fallthru
          _
        // Predicated region
        $region21: #{tpu_custom_call.1} parent=11 // pred_check
          %p233 = pneg %p138
        $region22: #{tpu_custom_call.1} parent=11 // pred_check_branch
          %235 = sbr.rel (%p233) target = $region24
        $region23: #{tpu_custom_call.1} parent=11 // pred_region
          _
        $region24: #{tpu_custom_call.1} parent=11 // pred_fallthru
          _
      $region12: #{tpu_custom_call.1} parent=5 // pred_fallthru
        _
      %p236 = scmp.lt.s32.totalorder %s23, 2
      // Predicated region
      $region25: #{tpu_custom_call.1} parent=5 // pred_check
        %p237 = pneg %p236
      $region26: #{tpu_custom_call.1} parent=5 // pred_check_branch
        %239 = sbr.rel (%p237) target = $region28
      $region27: #{tpu_custom_call.1} parent=5 // pred_region
        // Predicated region
        $region29: #{tpu_custom_call.1} parent=27 // pred_check
          %p240 = pneg %p43
        $region30: #{tpu_custom_call.1} parent=27 // pred_check_branch
          %242 = sbr.rel (%p240) target = $region32
        $region31: #{tpu_custom_call.1} parent=27 // pred_region
          %s243 = sand.u32 %s33, 1
          %s244 = scalar_lea.sflag [#allocation3], %s243
          %s245 = sand.u32 %s33, 1
          %s246 = smul.addr %s245, 8
          %s247 = scalar_lea.vmem [#allocation2], %s246
          %249 = vsyncadd %s244, 0
          %s250 = smul.addr %s23, 8
          %s251 = scalar_lea.hbm %s0, %s250
          %s253 = sshll.u32 %s251, 4
          %s254 = int_to_ptr.hbm [resolvable:$true] %s253
          %s255 = sshll.u32 %s247, 4
          %s256 = int_to_ptr.vmem [resolvable:$true] %s255
          %258 = dma.hbm_to_vmem [thread:$0]  %s254, 128, %s256, %s244
        $region32: #{tpu_custom_call.1} parent=27 // pred_fallthru
          _
        // Predicated region
        $region33: #{tpu_custom_call.1} parent=27 // pred_check
          %p259 = pneg %p69
        $region34: #{tpu_custom_call.1} parent=27 // pred_check_branch
          %261 = sbr.rel (%p259) target = $region36
        $region35: #{tpu_custom_call.1} parent=27 // pred_region
          %s262 = sand.u32 %s23, 1
          %s263 = scalar_lea.sflag [#allocation6], %s262
          %s264 = sand.u32 %s59, 1
          %s265 = smul.addr %s264, 64
          %s266 = scalar_lea.vmem [#allocation5], %s265
          %s267 = smul.u32 8, %s23
          %269 = vsyncadd %s263, 0
          %s270 = smul.addr %s267, 8
          %s271 = scalar_lea.hbm %s1, %s270
          %s272 = sshll.u32 %s271, 4
          %s273 = int_to_ptr.hbm [resolvable:$true] %s272
          %s274 = sshll.u32 %s266, 4
          %s275 = int_to_ptr.vmem [resolvable:$true] %s274
          %280 = dma.hbm_to_vmem [thread:$0]  %s273, 1024, %s275, %s263, 128, 128, 8
        $region36: #{tpu_custom_call.1} parent=27 // pred_fallthru
          _
      $region28: #{tpu_custom_call.1} parent=5 // pred_fallthru
        _
      %p281 = scmp.le.s32.totalorder 1, %s23
      %p282 = scmp.lt.s32.totalorder %s23, 3
      %p283 = pnand %p281, %p282
      %p284 = pneg %p283
      // Predicated region
      $region37: #{tpu_custom_call.1} parent=5 // pred_check
        _
      $region38: #{tpu_custom_call.1} parent=5 // pred_check_branch
        %286 = sbr.rel (%p283) target = $region40
      $region39: #{tpu_custom_call.1} parent=5 // pred_region
        %s287 = ssub.s32 %s23, 1
        %s288 = sand.u32 %s36, 1
        %s289 = scalar_lea.sflag [#allocation3], %s288
        %s290 = sand.u32 %s36, 1
        %s291 = smul.addr %s290, 8
        %s292 = scalar_lea.vmem [#allocation2], %s291
        // Predicated region
        $region41: #{tpu_custom_call.1} parent=39 // pred_check
          %p293 = pneg %p49
        $region42: #{tpu_custom_call.1} parent=39 // pred_check_branch
          %295 = sbr.rel (%p293) target = $region44
        $region43: #{tpu_custom_call.1} parent=39 // pred_region
          %297 = dma.done %s289, 128
        $region44: #{tpu_custom_call.1} parent=39 // pred_fallthru
          _
        %s298 = sand.u32 %s28, 1
        %s299 = scalar_lea.sflag [#allocation6], %s298
        %s300 = sand.u32 %s62, 1
        %s301 = smul.addr %s300, 64
        %s302 = scalar_lea.vmem [#allocation5], %s301
        // Predicated region
        $region45: #{tpu_custom_call.1} parent=39 // pred_check
          %p303 = pneg %p75
        $region46: #{tpu_custom_call.1} parent=39 // pred_check_branch
          %305 = sbr.rel (%p303) target = $region48
        $region47: #{tpu_custom_call.1} parent=39 // pred_region
          %307 = dma.done %s299, 1024
        $region48: #{tpu_custom_call.1} parent=39 // pred_fallthru
          _
        // Predicated region
        $region49: #{tpu_custom_call.1} parent=39 // pred_check
          %p308 = pneg %p96
        $region50: #{tpu_custom_call.1} parent=39 // pred_check_branch
          %310 = sbr.rel (%p308) target = $region52
        $region51: #{tpu_custom_call.1} parent=39 // pred_region
          %312 = dma.done [#allocation6], 512
        $region52: #{tpu_custom_call.1} parent=39 // pred_fallthru
          _
        // Predicated region
        $region53: #{tpu_custom_call.1} parent=39 // pred_check
          %p313 = pneg %p117
        $region54: #{tpu_custom_call.1} parent=39 // pred_check_branch
          %315 = sbr.rel (%p313) target = $region56
        $region55: #{tpu_custom_call.1} parent=39 // pred_region
          %317 = dma.done [#allocation9], 512
        $region56: #{tpu_custom_call.1} parent=39 // pred_fallthru
          _
        %s318 = sand.u32 %s36, 1
        %s319 = scalar_lea.sflag [#allocation3], %s318
        %s320 = sand.u32 %s36, 1
        %s321 = smul.addr %s320, 8
        %s322 = scalar_lea.vmem [#allocation2], %s321
        %p323 = pneg %p49
        %p324 = pneg %p46
        %s325 = sand.u32 %s28, 1
        %s326 = scalar_lea.sflag [#allocation6], %s325
        %s327 = sand.u32 %s62, 1
        %s328 = smul.addr %s327, 64
        %s329 = scalar_lea.vmem [#allocation5], %s328
        %p330 = pneg %p75
        %p331 = pneg %p72
        %p332 = pneg %p96
        %p333 = pneg %p93
        %p334 = pneg %p117
        %p335 = pneg %p114
        %p336 = pneg %p138
        %p337 = pneg %p135
        %p338 = pneg %p164
        %p339 = pneg %p161
        %s340 = sand.u32 %s151, 1
        %s341 = scalar_lea.sflag [#allocation4], %s340
        %s342 = sand.u32 %s151, 1
        %s343 = smul.addr %s342, 8
        %s344 = scalar_lea.vmem [#allocation10], %s343
        %p345 = pneg %p190
        %p346 = pneg %p187
        %p347 = scmp.lt.s32.totalorder %s28, 1
        %s348 = scalar_select %p347, %s28, 1
        %s349 = smul.addr %s348, 8
        %s350 = scalar_lea.vmem %s6, %s349
        %s351 = smul.u32 8, %s28
        %p352 = scmp.lt.s32.totalorder %s28, 1
        %s353 = scalar_select %p352, %s28, 1
        %s354 = smul.addr %s353, 8
        %s355 = scalar_lea.vmem %s6, %s354
        %v356 = vld [vmem:[%s292] sm:$0xff]
        %v357 = vld [vmem:[%s302] sm:$0xff]
        %v358 = vld [vmem:[%s302 + $0x8] sm:$0xff]
        %v359 = vld [vmem:[%s302 + $0x10] sm:$0xff]
        %v360 = vld [vmem:[%s302 + $0x18] sm:$0xff]
        %v361 = vld [vmem:[%s302 + $0x20] sm:$0xff]
        %v362 = vld [vmem:[%s302 + $0x28] sm:$0xff]
        %v363 = vld [vmem:[%s302 + $0x30] sm:$0xff]
        %v364 = vld [vmem:[%s302 + $0x38] sm:$0xff]
        %v366 = vrot.slane %v356, 1
        %v367 = vrot.slane %v356, 2
        %v368 = vrot.slane %v356, 3
        %v369 = vrot.slane %v356, 4
        %v370 = vrot.slane %v356, 5
        %v371 = vrot.slane %v356, 6
        %v372 = vrot.slane %v356, 7
        %v373 = vperm.slane %v356, 0
        %v374 = vperm.slane %v366, 0
        %v375 = vperm.slane %v367, 0
        %v376 = vperm.slane %v368, 0
        %v377 = vperm.slane %v369, 0
        %v378 = vperm.slane %v370, 0
        %v379 = vperm.slane %v371, 0
        %v380 = vperm.slane %v372, 0
        %v389 = vmul.f32 %v357, %v373
        %v390 = vmul.f32 %v358, %v374
        %v391 = vmul.f32 %v359, %v375
        %v392 = vmul.f32 %v360, %v376
        %v393 = vmul.f32 %v361, %v377
        %v394 = vmul.f32 %v362, %v378
        %v395 = vmul.f32 %v363, %v379
        %v396 = vmul.f32 %v364, %v380
        %vm397 = vcmask 261120
        %v398 = vsel %vm397, %v389, 0.0
        %399 = vadd.xlane.f32.xlu0 %v398
        %v400 = vpop.xlane.xlu0 %399
        %v401 = vsel %vm397, %v390, 0.0
        %402 = vadd.xlane.f32.xlu0 %v401
        %v403 = vpop.xlane.xlu0 %402
        %v404 = vsel %vm397, %v391, 0.0
        %405 = vadd.xlane.f32.xlu0 %v404
        %v406 = vpop.xlane.xlu0 %405
        %v407 = vsel %vm397, %v392, 0.0
        %408 = vadd.xlane.f32.xlu0 %v407
        %v409 = vpop.xlane.xlu0 %408
        %v410 = vsel %vm397, %v393, 0.0
        %411 = vadd.xlane.f32.xlu0 %v410
        %v412 = vpop.xlane.xlu0 %411
        %v413 = vsel %vm397, %v394, 0.0
        %414 = vadd.xlane.f32.xlu0 %v413
        %v415 = vpop.xlane.xlu0 %414
        %v416 = vsel %vm397, %v395, 0.0
        %417 = vadd.xlane.f32.xlu0 %v416
        %v418 = vpop.xlane.xlu0 %417
        %v419 = vsel %vm397, %v396, 0.0
        %420 = vadd.xlane.f32.xlu0 %v419
        %v421 = vpop.xlane.xlu0 %420
        %v430 = vlaneseq
        %v431 = vand.u32 %v430, 127
        %v432 = vperm.slane %v400, %v431
        %v433 = vperm.slane %v403, %v431
        %v434 = vperm.slane %v406, %v431
        %v435 = vperm.slane %v409, %v431
        %v436 = vperm.slane %v412, %v431
        %v437 = vperm.slane %v415, %v431
        %v438 = vperm.slane %v418, %v431
        %v439 = vperm.slane %v421, %v431
        %vm440 = vcmask 1041409
        %v441 = vsel %vm440, %v433, %v432
        %vm442 = vcmask 1042434
        %v443 = vsel %vm442, %v434, %v441
        %vm444 = vcmask 1043459
        %v445 = vsel %vm444, %v435, %v443
        %vm446 = vcmask 1044484
        %v447 = vsel %vm446, %v436, %v445
        %vm448 = vcmask 1045509
        %v449 = vsel %vm448, %v437, %v447
        %vm450 = vcmask 1046534
        %v451 = vsel %vm450, %v438, %v449
        %vm452 = vcmask 1047559
        %v453 = vsel %vm452, %v439, %v451
        %vm455 = vcmask 64512
        %v456 = vsel %vm455, %v453, -inf
        %457 = vmax.xlane.f32.xlu0 %v456
        %v458 = vpop.xlane.xlu0 %457
        %v460 = vperm.slane %v458, 0
        %v461 = vperm.slane %v458, 1
        %v462 = vperm.slane %v458, 2
        %v463 = vperm.slane %v458, 3
        %v464 = vperm.slane %v458, 4
        %v465 = vperm.slane %v458, 5
        %v466 = vperm.slane %v458, 6
        %v467 = vperm.slane %v458, 7
        %v476 = vsub.f32 %v400, %v460
        %v477 = vsub.f32 %v403, %v461
        %v478 = vsub.f32 %v406, %v462
        %v479 = vsub.f32 %v409, %v463
        %v480 = vsub.f32 %v412, %v464
        %v481 = vsub.f32 %v415, %v465
        %v482 = vsub.f32 %v418, %v466
        %v483 = vsub.f32 %v421, %v467
        %v484 = vmul.f32 %v476, 1.442695
        %v485 = vpow.pop %v484
        %v486 = vmul.f32 %v477, 1.442695
        %v487 = vpow.pop %v486
        %v488 = vmul.f32 %v478, 1.442695
        %v489 = vpow.pop %v488
        %v490 = vmul.f32 %v479, 1.442695
        %v491 = vpow.pop %v490
        %v492 = vmul.f32 %v480, 1.442695
        %v493 = vpow.pop %v492
        %v494 = vmul.f32 %v481, 1.442695
        %v495 = vpow.pop %v494
        %v496 = vmul.f32 %v482, 1.442695
        %v497 = vpow.pop %v496
        %v498 = vmul.f32 %v483, 1.442695
        %v499 = vpow.pop %v498
        %508 = vset.pattern.permute.xlu0 0
        %509 = vperm.xlu0 %508, %v485
        %v510 = vpop.permute.xlu0 %509
        %511 = vset.pattern.permute.xlu0 0
        %512 = vperm.xlu0 %511, %v487
        %v513 = vpop.permute.xlu0 %512
        %514 = vset.pattern.permute.xlu0 0
        %515 = vperm.xlu0 %514, %v489
        %v516 = vpop.permute.xlu0 %515
        %517 = vset.pattern.permute.xlu0 0
        %518 = vperm.xlu0 %517, %v491
        %v519 = vpop.permute.xlu0 %518
        %520 = vset.pattern.permute.xlu0 0
        %521 = vperm.xlu0 %520, %v493
        %v522 = vpop.permute.xlu0 %521
        %523 = vset.pattern.permute.xlu0 0
        %524 = vperm.xlu0 %523, %v495
        %v525 = vpop.permute.xlu0 %524
        %526 = vset.pattern.permute.xlu0 0
        %527 = vperm.xlu0 %526, %v497
        %v528 = vpop.permute.xlu0 %527
        %529 = vset.pattern.permute.xlu0 0
        %530 = vperm.xlu0 %529, %v499
        %v531 = vpop.permute.xlu0 %530
        %v532 = vperm.slane %v510, %v431
        %v533 = vperm.slane %v513, %v431
        %v534 = vperm.slane %v516, %v431
        %v535 = vperm.slane %v519, %v431
        %v536 = vperm.slane %v522, %v431
        %v537 = vperm.slane %v525, %v431
        %v538 = vperm.slane %v528, %v431
        %v539 = vperm.slane %v531, %v431
        %v540 = vsel %vm440, %v533, %v532
        %v541 = vsel %vm442, %v534, %v540
        %v542 = vsel %vm444, %v535, %v541
        %v543 = vsel %vm446, %v536, %v542
        %v544 = vsel %vm448, %v537, %v543
        %v545 = vsel %vm450, %v538, %v544
        %v546 = vsel %vm452, %v539, %v545
        %v548 = vsel %vm455, %v546, 0.0
        %549 = vadd.xlane.f32.xlu0 %v548
        %v550 = vpop.xlane.xlu0 %549
        %v552 = vperm.slane %v550, 0
        %v553 = vperm.slane %v550, 1
        %v554 = vperm.slane %v550, 2
        %v555 = vperm.slane %v550, 3
        %v556 = vperm.slane %v550, 4
        %v557 = vperm.slane %v550, 5
        %v558 = vperm.slane %v550, 6
        %v559 = vperm.slane %v550, 7
        %v568 = vrcp.pop %v552
        %v569 = vmul.f32 %v552, %v568
        %v570 = vsub.f32 1.0, %v569
        %v571 = vmul.f32 %v568, %v570
        %v572 = vadd.f32 %v568, %v571
        %vm573 = vweird.f32 %v552
        %vm574 = vweird.f32 %v568
        %vm575 = vmor %vm573, %vm574
        %v576 = vsel %vm575, %v568, %v572
        %v577 = vand.u32 2147483647, %v552
        %vm578 = vcmp.eq.f32.partialorder %v577, 8.507059e+37
        %v579 = vand.u32 %v552, 2147483648
        %v580 = vor.u32 1.1754944e-38, %v579
        %v581 = vsel %vm578, %v580, %v576
        %v582 = vmul.f32 %v485, %v581
        %v583 = vrcp.pop %v553
        %v584 = vmul.f32 %v553, %v583
        %v585 = vsub.f32 1.0, %v584
        %v586 = vmul.f32 %v583, %v585
        %v587 = vadd.f32 %v583, %v586
        %vm588 = vweird.f32 %v553
        %vm589 = vweird.f32 %v583
        %vm590 = vmor %vm588, %vm589
        %v591 = vsel %vm590, %v583, %v587
        %v592 = vand.u32 2147483647, %v553
        %vm593 = vcmp.eq.f32.partialorder %v592, 8.507059e+37
        %v594 = vand.u32 %v553, 2147483648
        %v595 = vor.u32 1.1754944e-38, %v594
        %v596 = vsel %vm593, %v595, %v591
        %v597 = vmul.f32 %v487, %v596
        %v598 = vrcp.pop %v554
        %v599 = vmul.f32 %v554, %v598
        %v600 = vsub.f32 1.0, %v599
        %v601 = vmul.f32 %v598, %v600
        %v602 = vadd.f32 %v598, %v601
        %vm603 = vweird.f32 %v554
        %vm604 = vweird.f32 %v598
        %vm605 = vmor %vm603, %vm604
        %v606 = vsel %vm605, %v598, %v602
        %v607 = vand.u32 2147483647, %v554
        %vm608 = vcmp.eq.f32.partialorder %v607, 8.507059e+37
        %v609 = vand.u32 %v554, 2147483648
        %v610 = vor.u32 1.1754944e-38, %v609
        %v611 = vsel %vm608, %v610, %v606
        %v612 = vmul.f32 %v489, %v611
        %v613 = vrcp.pop %v555
        %v614 = vmul.f32 %v555, %v613
        %v615 = vsub.f32 1.0, %v614
        %v616 = vmul.f32 %v613, %v615
        %v617 = vadd.f32 %v613, %v616
        %vm618 = vweird.f32 %v555
        %vm619 = vweird.f32 %v613
        %vm620 = vmor %vm618, %vm619
        %v621 = vsel %vm620, %v613, %v617
        %v622 = vand.u32 2147483647, %v555
        %vm623 = vcmp.eq.f32.partialorder %v622, 8.507059e+37
        %v624 = vand.u32 %v555, 2147483648
        %v625 = vor.u32 1.1754944e-38, %v624
        %v626 = vsel %vm623, %v625, %v621
        %v627 = vmul.f32 %v491, %v626
        %v628 = vrcp.pop %v556
        %v629 = vmul.f32 %v556, %v628
        %v630 = vsub.f32 1.0, %v629
        %v631 = vmul.f32 %v628, %v630
        %v632 = vadd.f32 %v628, %v631
        %vm633 = vweird.f32 %v556
        %vm634 = vweird.f32 %v628
        %vm635 = vmor %vm633, %vm634
        %v636 = vsel %vm635, %v628, %v632
        %v637 = vand.u32 2147483647, %v556
        %vm638 = vcmp.eq.f32.partialorder %v637, 8.507059e+37
        %v639 = vand.u32 %v556, 2147483648
        %v640 = vor.u32 1.1754944e-38, %v639
        %v641 = vsel %vm638, %v640, %v636
        %v642 = vmul.f32 %v493, %v641
        %v643 = vrcp.pop %v557
        %v644 = vmul.f32 %v557, %v643
        %v645 = vsub.f32 1.0, %v644
        %v646 = vmul.f32 %v643, %v645
        %v647 = vadd.f32 %v643, %v646
        %vm648 = vweird.f32 %v557
        %vm649 = vweird.f32 %v643
        %vm650 = vmor %vm648, %vm649
        %v651 = vsel %vm650, %v643, %v647
        %v652 = vand.u32 2147483647, %v557
        %vm653 = vcmp.eq.f32.partialorder %v652, 8.507059e+37
        %v654 = vand.u32 %v557, 2147483648
        %v655 = vor.u32 1.1754944e-38, %v654
        %v656 = vsel %vm653, %v655, %v651
        %v657 = vmul.f32 %v495, %v656
        %v658 = vrcp.pop %v558
        %v659 = vmul.f32 %v558, %v658
        %v660 = vsub.f32 1.0, %v659
        %v661 = vmul.f32 %v658, %v660
        %v662 = vadd.f32 %v658, %v661
        %vm663 = vweird.f32 %v558
        %vm664 = vweird.f32 %v658
        %vm665 = vmor %vm663, %vm664
        %v666 = vsel %vm665, %v658, %v662
        %v667 = vand.u32 2147483647, %v558
        %vm668 = vcmp.eq.f32.partialorder %v667, 8.507059e+37
        %v669 = vand.u32 %v558, 2147483648
        %v670 = vor.u32 1.1754944e-38, %v669
        %v671 = vsel %vm668, %v670, %v666
        %v672 = vmul.f32 %v497, %v671
        %v673 = vrcp.pop %v559
        %v674 = vmul.f32 %v559, %v673
        %v675 = vsub.f32 1.0, %v674
        %v676 = vmul.f32 %v673, %v675
        %v677 = vadd.f32 %v673, %v676
        %vm678 = vweird.f32 %v559
        %vm679 = vweird.f32 %v673
        %vm680 = vmor %vm678, %vm679
        %v681 = vsel %vm680, %v673, %v677
        %v682 = vand.u32 2147483647, %v559
        %vm683 = vcmp.eq.f32.partialorder %v682, 8.507059e+37
        %v684 = vand.u32 %v559, 2147483648
        %v685 = vor.u32 1.1754944e-38, %v684
        %v686 = vsel %vm683, %v685, %v681
        %v687 = vmul.f32 %v499, %v686
        %696 = vset.pattern.permute.xlu0 0
        %697 = vperm.xlu0 %696, %v582
        %v698 = vpop.permute.xlu0 %697
        %699 = vset.pattern.permute.xlu0 0
        %700 = vperm.xlu0 %699, %v597
        %v701 = vpop.permute.xlu0 %700
        %702 = vset.pattern.permute.xlu0 0
        %703 = vperm.xlu0 %702, %v612
        %v704 = vpop.permute.xlu0 %703
        %705 = vset.pattern.permute.xlu0 0
        %706 = vperm.xlu0 %705, %v627
        %v707 = vpop.permute.xlu0 %706
        %708 = vset.pattern.permute.xlu0 0
        %709 = vperm.xlu0 %708, %v642
        %v710 = vpop.permute.xlu0 %709
        %711 = vset.pattern.permute.xlu0 0
        %712 = vperm.xlu0 %711, %v657
        %v713 = vpop.permute.xlu0 %712
        %714 = vset.pattern.permute.xlu0 0
        %715 = vperm.xlu0 %714, %v672
        %v716 = vpop.permute.xlu0 %715
        %717 = vset.pattern.permute.xlu0 0
        %718 = vperm.xlu0 %717, %v687
        %v719 = vpop.permute.xlu0 %718
        %v720 = vperm.slane %v698, %v431
        %v721 = vperm.slane %v701, %v431
        %v722 = vperm.slane %v704, %v431
        %v723 = vperm.slane %v707, %v431
        %v724 = vperm.slane %v710, %v431
        %v725 = vperm.slane %v713, %v431
        %v726 = vperm.slane %v716, %v431
        %v727 = vperm.slane %v719, %v431
        %v728 = vsel %vm440, %v721, %v720
        %v729 = vsel %vm442, %v722, %v728
        %v730 = vsel %vm444, %v723, %v729
        %v731 = vsel %vm446, %v724, %v730
        %v732 = vsel %vm448, %v725, %v731
        %v733 = vsel %vm450, %v726, %v732
        %v734 = vsel %vm452, %v727, %v733
        %736 = vst.msk [vmem:[%s355] sm:$0xff] %vm455, %v734
        %v745 = vmul.f32 %v698, %v357
        %v746 = vmul.f32 %v701, %v358
        %v747 = vmul.f32 %v704, %v359
        %v748 = vmul.f32 %v707, %v360
        %v749 = vmul.f32 %v710, %v361
        %v750 = vmul.f32 %v713, %v362
        %v751 = vmul.f32 %v716, %v363
        %v752 = vmul.f32 %v719, %v364
        %v753 = vsel %vm397, %v745, 0.0
        %v754 = vrot.slane %v753, 4
        %v755 = vadd.f32 %v753, %v754
        %v756 = vrot.slane %v755, 2
        %v757 = vadd.f32 %v755, %v756
        %v758 = vrot.slane %v757, 1
        %v759 = vadd.f32 %v757, %v758
        %v760 = vsel %vm397, %v746, 0.0
        %v761 = vrot.slane %v760, 4
        %v762 = vadd.f32 %v760, %v761
        %v763 = vrot.slane %v762, 2
        %v764 = vadd.f32 %v762, %v763
        %v765 = vrot.slane %v764, 1
        %v766 = vadd.f32 %v764, %v765
        %v767 = vsel %vm397, %v747, 0.0
        %v768 = vrot.slane %v767, 4
        %v769 = vadd.f32 %v767, %v768
        %v770 = vrot.slane %v769, 2
        %v771 = vadd.f32 %v769, %v770
        %v772 = vrot.slane %v771, 1
        %v773 = vadd.f32 %v771, %v772
        %v774 = vsel %vm397, %v748, 0.0
        %v775 = vrot.slane %v774, 4
        %v776 = vadd.f32 %v774, %v775
        %v777 = vrot.slane %v776, 2
        %v778 = vadd.f32 %v776, %v777
        %v779 = vrot.slane %v778, 1
        %v780 = vadd.f32 %v778, %v779
        %v781 = vsel %vm397, %v749, 0.0
        %v782 = vrot.slane %v781, 4
        %v783 = vadd.f32 %v781, %v782
        %v784 = vrot.slane %v783, 2
        %v785 = vadd.f32 %v783, %v784
        %v786 = vrot.slane %v785, 1
        %v787 = vadd.f32 %v785, %v786
        %v788 = vsel %vm397, %v750, 0.0
        %v789 = vrot.slane %v788, 4
        %v790 = vadd.f32 %v788, %v789
        %v791 = vrot.slane %v790, 2
        %v792 = vadd.f32 %v790, %v791
        %v793 = vrot.slane %v792, 1
        %v794 = vadd.f32 %v792, %v793
        %v795 = vsel %vm397, %v751, 0.0
        %v796 = vrot.slane %v795, 4
        %v797 = vadd.f32 %v795, %v796
        %v798 = vrot.slane %v797, 2
        %v799 = vadd.f32 %v797, %v798
        %v800 = vrot.slane %v799, 1
        %v801 = vadd.f32 %v799, %v800
        %v802 = vsel %vm397, %v752, 0.0
        %v803 = vrot.slane %v802, 4
        %v804 = vadd.f32 %v802, %v803
        %v805 = vrot.slane %v804, 2
        %v806 = vadd.f32 %v804, %v805
        %v807 = vrot.slane %v806, 1
        %v808 = vadd.f32 %v806, %v807
        %v809 = vld [vmem:[#allocation7] sm:$0xff]
        %v810 = vld [vmem:[#allocation7 + $0x8] sm:$0xff]
        %v811 = vld [vmem:[#allocation7 + $0x10] sm:$0xff]
        %v812 = vld [vmem:[#allocation7 + $0x18] sm:$0xff]
        %v813 = vld [vmem:[#allocation8] sm:$0xff]
        %v814 = vld [vmem:[#allocation8 + $0x8] sm:$0xff]
        %v815 = vld [vmem:[#allocation8 + $0x10] sm:$0xff]
        %v816 = vld [vmem:[#allocation8 + $0x18] sm:$0xff]
        %v817 = vsel %vm397, %v356, 0
        %819 = vmatpush.msra.mxu0 0.0
        %820 = vmatpush.msra.mxu0 0.0
        %821 = vmatpush.msra.mxu0 0.0
        %822 = vmatpush.msra.mxu0 0.0
        %823 = vmatpush.msra.mxu0 0.0
        %824 = vmatpush.msra.mxu0 0.0
        %825 = vmatpush.msra.mxu0 0.0
        %826 = vmatpush.msra.mxu0 0.0
        %827 = vmatpush.msra.mxu0 0.0
        %828 = vmatpush.msra.mxu0 0.0
        %829 = vmatpush.msra.mxu0 0.0
        %830 = vmatpush.msra.mxu0 0.0
        %831 = vmatpush.msra.mxu0 %v816
        %832 = vmatpush.msra.mxu0 %v815
        %833 = vmatpush.msra.mxu0 %v814
        %834 = vmatpush.msra.mxu0 %v813
        %835 = vmatmul.f32.gmra.mxu0 %v817
        %v836 = vpop.f32.mrf.mxu0
        %v837 = vadd.f32 0.0, %v836
        %838 = vdwg.mxu0
        %v847 = vsel %vm440, %v766, %v759
        %v848 = vsel %vm442, %v773, %v847
        %v849 = vsel %vm444, %v780, %v848
        %v850 = vsel %vm446, %v787, %v849
        %v851 = vsel %vm448, %v794, %v850
        %v852 = vsel %vm450, %v801, %v851
        %v853 = vsel %vm452, %v808, %v852
        %v854 = vsel %vm397, %v853, 0
        %856 = vmatpush.msra.mxu0 0.0
        %857 = vmatpush.msra.mxu0 0.0
        %858 = vmatpush.msra.mxu0 0.0
        %859 = vmatpush.msra.mxu0 0.0
        %860 = vmatpush.msra.mxu0 0.0
        %861 = vmatpush.msra.mxu0 0.0
        %862 = vmatpush.msra.mxu0 0.0
        %863 = vmatpush.msra.mxu0 0.0
        %864 = vmatpush.msra.mxu0 0.0
        %865 = vmatpush.msra.mxu0 0.0
        %866 = vmatpush.msra.mxu0 0.0
        %867 = vmatpush.msra.mxu0 0.0
        %868 = vmatpush.msra.mxu0 %v812
        %869 = vmatpush.msra.mxu0 %v811
        %870 = vmatpush.msra.mxu0 %v810
        %871 = vmatpush.msra.mxu0 %v809
        %872 = vmatmul.f32.gmra.mxu0 %v854
        %v873 = vpop.f32.mrf.mxu0
        %v874 = vadd.f32 %v837, %v873
        %875 = vdwg.mxu0
        %v876 = vld [vmem:[%s4] sm:$0x1]
        %v878 = vperm.slane %v876, 0
        %v880 = vadd.f32 %v874, %v878
        %v881 = vmax.f32 %v880, 0.0
        %882 = vst.msk [vmem:[%s344] sm:$0xff] %vm397, %v881
        %s883 = sand.u32 %s151, 1
        %s884 = scalar_lea.sflag [#allocation4], %s883
        %s885 = sand.u32 %s151, 1
        %s886 = smul.addr %s885, 8
        %s887 = scalar_lea.vmem [#allocation10], %s886
        %p888 = scmp.lt.s32.totalorder %s28, 1
        %s889 = scalar_select %p888, %s28, 1
        %s890 = smul.addr %s889, 8
        %s891 = scalar_lea.vmem %s6, %s890
        // Predicated region
        $region57: #{tpu_custom_call.1} parent=39 // pred_check
          %p892 = pneg %p161
        $region58: #{tpu_custom_call.1} parent=39 // pred_check_branch
          %894 = sbr.rel (%p892) target = $region60
        $region59: #{tpu_custom_call.1} parent=39 // pred_region
          %896 = vsyncadd %s884, 0
          %s897 = smul.addr %s28, 8
          %s898 = scalar_lea.hbm %s5, %s897
          %s900 = sshll.u32 %s887, 4
          %s901 = int_to_ptr.vmem [resolvable:$true] %s900
          %s902 = sshll.u32 %s898, 4
          %s903 = int_to_ptr.hbm [resolvable:$true] %s902
          %905 = dma.vmem_to_hbm [thread:$0]  %s901, 128, %s903, %s884
        $region60: #{tpu_custom_call.1} parent=39 // pred_fallthru
          _
        // Predicated region
        $region61: #{tpu_custom_call.1} parent=39 // pred_check
          %p906 = pneg %p187
        $region62: #{tpu_custom_call.1} parent=39 // pred_check_branch
          %908 = sbr.rel (%p906) target = $region64
        $region63: #{tpu_custom_call.1} parent=39 // pred_region
          _
        $region64: #{tpu_custom_call.1} parent=39 // pred_fallthru
          _
      $region40: #{tpu_custom_call.1} parent=5 // pred_fallthru
        _
      %p909 = scmp.le.s32.totalorder 2, %s23
      // Predicated region
      $region65: #{tpu_custom_call.1} parent=5 // pred_check
        %p910 = pneg %p909
      $region66: #{tpu_custom_call.1} parent=5 // pred_check_branch
        %912 = sbr.rel (%p910) target = $region68
      $region67: #{tpu_custom_call.1} parent=5 // pred_region
        %s913 = ssub.s32 %s23, 2
        // Predicated region
        $region69: #{tpu_custom_call.1} parent=67 // pred_check
          %p914 = pneg %p167
        $region70: #{tpu_custom_call.1} parent=67 // pred_check_branch
          %916 = sbr.rel (%p914) target = $region72
        $region71: #{tpu_custom_call.1} parent=67 // pred_region
          %s917 = sand.u32 %s152, 1
          %s918 = scalar_lea.sflag [#allocation4], %s917
          %s919 = sand.u32 %s152, 1
          %s920 = smul.addr %s919, 8
          %s921 = scalar_lea.vmem [#allocation10], %s920
          %923 = dma.done %s918, 128
        $region72: #{tpu_custom_call.1} parent=67 // pred_fallthru
          _
        // Predicated region
        $region73: #{tpu_custom_call.1} parent=67 // pred_check
          %p924 = pneg %p193
        $region74: #{tpu_custom_call.1} parent=67 // pred_check_branch
          %926 = sbr.rel (%p924) target = $region76
        $region75: #{tpu_custom_call.1} parent=67 // pred_region
          %p927 = scmp.lt.s32.totalorder %s29, 1
          %s928 = scalar_select %p927, %s29, 1
          %s929 = smul.addr %s928, 8
          %s930 = scalar_lea.vmem %s6, %s929
        $region76: #{tpu_custom_call.1} parent=67 // pred_fallthru
          _
      $region68: #{tpu_custom_call.1} parent=5 // pred_fallthru
        _
    $region6: #{tpu_custom_call.1} parent=1 // loop_footer
      %s27 = sadd.s32 1, %s23
    $region7: #{tpu_custom_call.1} parent=1 // loop_footer_branch
      %22 = sbr.rel target = $region3
    $region8: #{tpu_custom_call.1} parent=1 // loop_exit
      _
    %931 = vsyncpa [#allocation3], 1
    %s932 = scalar_lea.sflag [#allocation3], 1
    %933 = vsyncpa %s932, 1
    %934 = vsyncpa [#allocation6], 1
    %s935 = scalar_lea.sflag [#allocation6], 1
    %936 = vsyncpa %s935, 1
    %937 = vsyncpa [#allocation9], 1
    %938 = vsyncpa [#allocation4], 1
    %s939 = scalar_lea.sflag [#allocation4], 1
    %940 = vsyncpa %s939, 1

</llo_original>
